<compile_context>
chip_gen: v7x
topology: tpu7x:2x2x1
jax: 0.10.0
libtpu: 0.0.40
codegen_flags: <defaults>
</compile_context>

<pallas_src>
import functools

import jax
import jax.numpy as jnp
import numpy as np
from jax.experimental import pallas as pl
from jax.experimental.pallas import tpu as pltpu


def _round_up(n, m):
    return (n + m - 1) // m * m


def _vmem_capacity_bytes():
    """Best-effort physical VMEM capacity; conservative (v7x) fallback."""
    try:
        info = pltpu.get_tpu_info()
        for name in ("vmem_capacity_bytes", "vmem_size_bytes", "vmem_bytes"):
            cap = getattr(info, name, None)
            if cap:
                return int(cap)
    except Exception:
        pass
    return 64 * 1024 * 1024  # v7x per-TensorCore VMEM


def _center_loss_kernel(labels_col_ref, labels_row_ref, x_ref, centers_ref,
                        loss_ref, new_centers_ref, *, alpha):
    B = labels_col_ref.shape[0]       # padded batch (multiple of 128)
    C = centers_ref.shape[0]          # padded num_classes (multiple of 128)

    centers = centers_ref[...]        # (C, Td) f32
    x = x_ref[...]                    # (B, Td) f32

    # (B, C) exact 0/1 one-hot for the gather; padded rows carry label -1.
    class_ids = jax.lax.broadcasted_iota(jnp.int32, (B, C), 1)
    onehot = (labels_col_ref[...] == class_ids).astype(jnp.float32)

    # Gather via MXU: batch_centers[b, :] = centers[labels[b], :].
    # HIGHEST keeps the f32 centers operand exact (Mosaic does not support
    # per-operand precision tuples, so the one-hot operand shares it).
    batch_centers = jax.lax.dot_general(
        onehot, centers, (((1,), (0,)), ((), ())),
        preferred_element_type=jnp.float32,
        precision=jax.lax.Precision.HIGHEST)
    diff = x - batch_centers                               # (B, Td)

    # Per-D-tile partial loss (summed in the wrapper).
    loss_ref[0, 0] = jnp.sum(diff * diff)

    # (C, B) one-hot built directly in transposed orientation so the scatter
    # is a plain matmul (no cross-lane transpose of a (B, C) operand).
    row_ids = jax.lax.broadcasted_iota(jnp.int32, (C, B), 0)
    onehot_t = (labels_row_ref[...] == row_ids).astype(jnp.float32)

    # Scatter-add via MXU: duplicate labels accumulate, matching index_add_
    # up to fp reassociation.
    scatter = jax.lax.dot_general(
        onehot_t, diff, (((1,), (0,)), ((), ())),
        preferred_element_type=jnp.float32,
        precision=jax.lax.Precision.HIGHEST)
    new_centers_ref[...] = centers + alpha * scatter


def center_loss_forward(x, labels, centers, alpha=0.01):
    """Returns (loss_scalar, updated_centers)."""
    B, D = x.shape
    C, Dc = centers.shape
    assert D == Dc

    # 128-align batch and classes: C is the MXU contraction dim of the gather,
    # B of the scatter; 128 padding gives lane-dense, full-width MXU tiles.
    # Padded batch rows get label -1 (matches no class) + zero features.
    B_pad = _round_up(max(B, 8), 128)
    C_pad = _round_up(max(C, 8), 128)
    D_pad0 = _round_up(D, 128)

    # --- VMEM-budgeted feature tiling (generation-aware) --------------------
    vmem_cap = _vmem_capacity_bytes()
    # Per feature column per step: double-buffered x + centers-in + centers-out.
    per_d = 4 * (2 * B_pad + 4 * C_pad)
    # D-invariant residents: labels + both one-hots (+ iota / split temporaries).
    fixed = 4 * (2 * B_pad) + 4 * 8 * B_pad * C_pad
    budget = int(vmem_cap * 0.5) - fixed
    tile_cap = max(128, min((budget // per_d) // 128 * 128, 2048))
    tile_cap = min(tile_cap, D_pad0)
    if D_pad0 > 128:
        # Keep >= 2 grid steps: feeds both v7x TensorCores and pipelines DMA.
        tile_cap = min(tile_cap, _round_up(pl.cdiv(D_pad0, 2), 128))
    tile_cap = max(tile_cap, 128)

    # Prefer the largest tile <= tile_cap that divides D_pad0; if that is much
    # smaller than the cap, pad D up to a multiple of the cap instead (zero
    # padding is semantically inert here).
    tile_d = 128
    for t in range(128, tile_cap + 1, 128):
        if D_pad0 % t == 0:
            tile_d = t
    if D_pad0 % tile_cap != 0 and tile_cap >= 2 * tile_d:
        tile_d = tile_cap
    D_pad = _round_up(D_pad0, tile_d)
    n_tiles = D_pad // tile_d

    # --- Pad operands (skipped when already aligned) -------------------------
    x_p = x.astype(jnp.float32)
    centers_p = centers.astype(jnp.float32)
    if (B_pad, D_pad) != (B, D):
        x_p = jnp.pad(x_p, ((0, B_pad - B), (0, D_pad - D)))
    if (C_pad, D_pad) != (C, D):
        centers_p = jnp.pad(centers_p, ((0, C_pad - C), (0, D_pad - D)))
    labels_i32 = labels.astype(jnp.int32)
    labels_col = jnp.full((B_pad, 1), -1, jnp.int32).at[:B, 0].set(labels_i32)
    labels_row = jnp.full((1, B_pad), -1, jnp.int32).at[0, :B].set(labels_i32)

    # Explicit scoped-VMEM limit derived from the chosen tiling (+ headroom for
    # the compiler's f32-matmul operand splits), clamped to physical capacity.
    vmem_limit = (fixed + per_d * tile_d
                  + 4 * (B_pad + C_pad) * tile_d + (4 << 20))
    vmem_limit = int(min(vmem_cap, max(vmem_limit, 32 << 20)))

    kernel = functools.partial(_center_loss_kernel, alpha=alpha)

    loss_parts, new_centers = pl.pallas_call(
        kernel,
        grid=(n_tiles,),
        in_specs=[
            pl.BlockSpec((B_pad, 1), lambda d: (0, 0)),        # labels (col)
            pl.BlockSpec((1, B_pad), lambda d: (0, 0)),        # labels (row)
            pl.BlockSpec((B_pad, tile_d), lambda d: (0, d)),   # x tile
            pl.BlockSpec((C_pad, tile_d), lambda d: (0, d)),   # centers tile
        ],
        out_specs=(
            pl.BlockSpec((1, 1), lambda d: (d, 0),
                         memory_space=pltpu.MemorySpace.SMEM),  # partial loss
            pl.BlockSpec((C_pad, tile_d), lambda d: (0, d)),    # new centers
        ),
        out_shape=(
            jax.ShapeDtypeStruct((n_tiles, 1), jnp.float32),
            jax.ShapeDtypeStruct((C_pad, D_pad), jnp.float32),
        ),
        # Alias centers -> new_centers (no extra output buffer / no copy).
        input_output_aliases={3: 1},
        compiler_params=pltpu.CompilerParams(
            dimension_semantics=("parallel",),
            vmem_limit_bytes=vmem_limit),
    )(labels_col, labels_row, x_p, centers_p)

    loss = jnp.sum(loss_parts)
    if (C_pad, D_pad) == (C, D):
        return loss, new_centers
    return loss, new_centers[:C, :D]


def _reference(x, labels, centers, alpha):
    batch_centers = centers[labels]
    diff = x - batch_centers
    new_centers = centers.at[labels].add(alpha * diff)
    return jnp.sum(diff ** 2), new_centers


if __name__ == "__main__":
    # Small, deterministic problem: num_classes=8, feat_dim=128, batch=4.
    num_classes, feat_dim, batch, alpha = 8, 128, 4, 0.01

    key = jax.random.PRNGKey(0)
    k_centers, k_x = jax.random.split(key)

    # Deterministic init mirroring the module's __init__:
    #   centers = F.normalize(randn(num_classes, feat_dim), dim=1)
    centers_raw = jax.random.normal(k_centers, (num_classes, feat_dim),
                                    dtype=jnp.float32)
    centers = centers_raw / jnp.linalg.norm(centers_raw, axis=1, keepdims=True)

    x = jax.random.normal(k_x, (batch, feat_dim), dtype=jnp.float32)
    # Repeated label exercises index_add_ accumulation semantics.
    labels = jnp.array([1, 3, 1, 5], dtype=jnp.int32)

    # Reference computed (and materialized) before the kernel call.
    ref_loss, ref_centers = _reference(x, labels, centers, alpha)
    jax.block_until_ready((ref_loss, ref_centers))

    # Donate centers only when its (C, D) shape is already 128-aligned so the
    # io-alias is copy-free; otherwise padding makes the donation unusable.
    donate = (2,) if (num_classes % 128 == 0 and feat_dim % 128 == 0) else ()
    fwd = jax.jit(functools.partial(center_loss_forward, alpha=alpha),
                  donate_argnums=donate)
    loss, new_centers = fwd(x, labels, centers)
    jax.block_until_ready((loss, new_centers))

    np.testing.assert_allclose(np.asarray(loss), np.asarray(ref_loss),
                               rtol=1e-5, atol=1e-5)
    np.testing.assert_allclose(np.asarray(new_centers), np.asarray(ref_centers),
                               rtol=1e-5, atol=1e-6)

    print("KERNEL_OK")
</pallas_src>

<mosaic_0001>
module attributes {stable_mosaic.version = 11 : i64} {
  func.func @_center_loss_kernel(%arg0: i32, %arg1: memref<128x1xi32, #tpu.memory_space<vmem>>, %arg2: memref<1x128xi32, #tpu.memory_space<vmem>>, %arg3: memref<128x128xf32, #tpu.memory_space<vmem>>, %arg4: memref<128x128xf32, #tpu.memory_space<vmem>>, %arg5: memref<1x1xf32, #tpu.memory_space<smem>>, %arg6: memref<128x128xf32, #tpu.memory_space<vmem>>) attributes {dimension_semantics = [#tpu.dimension_semantics<parallel>], iteration_bounds = array<i64: 1>, scalar_prefetch = 0 : i64, scratch_operands = 0 : i64, tpu.core_type = #tpu.core_type<tc>, window_params = [{pipeline_mode = #tpu.pipeline_mode<synchronous>, transform_indices = @transform_0, window_bounds = array<i64: 128, 1>}, {pipeline_mode = #tpu.pipeline_mode<synchronous>, transform_indices = @transform_1, window_bounds = array<i64: 1, 128>}, {transform_indices = @transform_2, window_bounds = array<i64: 128, 128>}, {transform_indices = @transform_3, window_bounds = array<i64: 128, 128>}, {transform_indices = @transform_4, window_bounds = array<i64: 1, 1>}, {transform_indices = @transform_5, window_bounds = array<i64: 128, 128>}]} {
    %c0 = arith.constant 0 : index
    %c0_0 = arith.constant 0 : index
    %0 = vector.load %arg4[%c0, %c0_0] : memref<128x128xf32, #tpu.memory_space<vmem>>, vector<128x128xf32>
    %c0_1 = arith.constant 0 : index
    %c0_2 = arith.constant 0 : index
    %1 = vector.load %arg3[%c0_1, %c0_2] : memref<128x128xf32, #tpu.memory_space<vmem>>, vector<128x128xf32>
    %2 = tpu.iota {dimensions = array<i32: 1>} : vector<128x128xi32>
    %c0_3 = arith.constant 0 : index
    %c0_4 = arith.constant 0 : index
    %3 = vector.load %arg1[%c0_3, %c0_4] : memref<128x1xi32, #tpu.memory_space<vmem>>, vector<128x1xi32>
    %4 = vector.broadcast %3 : vector<128x1xi32> to vector<128x128xi32>
    %5 = arith.cmpi eq, %4, %2 : vector<128x128xi32>
    %6 = arith.extui %5 : vector<128x128xi1> to vector<128x128xi32>
    %7 = arith.sitofp %6 : vector<128x128xi32> to vector<128x128xf32>
    %cst = arith.constant dense<0.000000e+00> : vector<128x128xf32>
    %8 = tpu.matmul %7, %0, %cst {dimension_numbers = #tpu.dot_dimension_numbers<[1], [0], [0], [1], [0, 0, 1, 1], [], []>, precision = #tpu.contract_precision<fp32>} : vector<128x128xf32>, vector<128x128xf32>, vector<128x128xf32> -> vector<128x128xf32>
    %9 = arith.subf %1, %8 : vector<128x128xf32>
    %10 = arith.mulf %9, %9 : vector<128x128xf32>
    %11 = vector.shape_cast %10 : vector<128x128xf32> to vector<1x128x128xf32>
    %cst_5 = arith.constant dense<0.000000e+00> : vector<1xf32>
    %12 = vector.multi_reduction <add>, %11, %cst_5 [1, 2] : vector<1x128x128xf32> to vector<1xf32>
    %13 = vector.shape_cast %12 : vector<1xf32> to vector<1x1x1xf32>
    %14 = vector.extract %13[0, 0, 0] : f32 from vector<1x1x1xf32>
    %c0_6 = arith.constant 0 : index
    %c0_7 = arith.constant 0 : index
    %15 = memref.load %arg5[%c0_6, %c0_7] : memref<1x1xf32, #tpu.memory_space<smem>>
    memref.store %14, %arg5[%c0_6, %c0_7] : memref<1x1xf32, #tpu.memory_space<smem>>
    %16 = tpu.iota {dimensions = array<i32: 0>} : vector<128x128xi32>
    %c0_8 = arith.constant 0 : index
    %c0_9 = arith.constant 0 : index
    %17 = vector.load %arg2[%c0_8, %c0_9] : memref<1x128xi32, #tpu.memory_space<vmem>>, vector<1x128xi32>
    %18 = vector.broadcast %17 : vector<1x128xi32> to vector<128x128xi32>
    %19 = arith.cmpi eq, %18, %16 : vector<128x128xi32>
    %20 = arith.extui %19 : vector<128x128xi1> to vector<128x128xi32>
    %21 = arith.sitofp %20 : vector<128x128xi32> to vector<128x128xf32>
    %cst_10 = arith.constant dense<0.000000e+00> : vector<128x128xf32>
    %22 = tpu.matmul %21, %9, %cst_10 {dimension_numbers = #tpu.dot_dimension_numbers<[1], [0], [0], [1], [0, 0, 1, 1], [], []>, precision = #tpu.contract_precision<fp32>} : vector<128x128xf32>, vector<128x128xf32>, vector<128x128xf32> -> vector<128x128xf32>
    %cst_11 = arith.constant 0.00999999977 : f32
    %23 = vector.broadcast %cst_11 : f32 to vector<128x128xf32>
    %24 = arith.mulf %23, %22 : vector<128x128xf32>
    %25 = arith.addf %0, %24 : vector<128x128xf32>
    %c0_12 = arith.constant 0 : index
    %c0_13 = arith.constant 0 : index
    %26 = vector.load %arg6[%c0_12, %c0_13] : memref<128x128xf32, #tpu.memory_space<vmem>>, vector<128x128xf32>
    tpu.vector_store %arg6[%c0_12, %c0_13], %25 {strides = array<i32>} : memref<128x128xf32, #tpu.memory_space<vmem>>, vector<128x128xf32>,
    return
  }
  func.func @transform_0(%arg0: i32) -> (i32, i32) {
    %c0_i32 = arith.constant 0 : i32
    %c0_i32_0 = arith.constant 0 : i32
    %c0_i32_1 = arith.constant 0 : i32
    return %c0_i32, %c0_i32_0 : i32, i32
  }
  func.func @transform_1(%arg0: i32) -> (i32, i32) {
    %c0_i32 = arith.constant 0 : i32
    %c0_i32_0 = arith.constant 0 : i32
    %c0_i32_1 = arith.constant 0 : i32
    return %c0_i32, %c0_i32_0 : i32, i32
  }
  func.func @transform_2(%arg0: i32) -> (i32, i32) {
    %c0_i32 = arith.constant 0 : i32
    %c0_i32_0 = arith.constant 0 : i32
    return %c0_i32, %arg0 : i32, i32
  }
  func.func @transform_3(%arg0: i32) -> (i32, i32) {
    %c0_i32 = arith.constant 0 : i32
    %c0_i32_0 = arith.constant 0 : i32
    return %c0_i32, %arg0 : i32, i32
  }
  func.func @transform_4(%arg0: i32) -> (i32, i32) {
    %c0_i32 = arith.constant 0 : i32
    %c0_i32_0 = arith.constant 0 : i32
    return %arg0, %c0_i32 : i32, i32
  }
  func.func @transform_5(%arg0: i32) -> (i32, i32) {
    %c0_i32 = arith.constant 0 : i32
    %c0_i32_0 = arith.constant 0 : i32
    return %c0_i32, %arg0 : i32, i32
  }
}

</mosaic_0001>

<llo_original>
// kernel: center_loss_forward.1
$region0: #{center_loss_forward.1}
  #allocation0 [shape = 'u32[]', space=smem, size = 0x4, offset = 0x4, fixed_abs, tag = 'smem constant byte address 0x4 - core index']
  #allocation1 [shape = 'u32[144,128]{1,0:T(1,128)}', space=vmem, size = 0x12000, scoped, tag = 'internal scratch']
  %s0 = inlined_call_operand.vmem [shape: s32[128,1], index: 0, kind: input, shape index: {}]
  %s1 = inlined_call_operand.vmem [shape: s32[1,128], index: 1, kind: input, shape index: {}]
  %s2 = inlined_call_operand.vmem [shape: f32[128,128], index: 2, kind: input, shape index: {}]
  %s3 = inlined_call_operand.vmem [shape: f32[128,128], index: 3, kind: input, shape index: {}, may-alias: {3,5}]
  %s4 = inlined_call_operand.hbm [shape: f32[1,1], index: 4, kind: output, shape index: {0}]
  %s5 = inlined_call_operand.vmem [shape: f32[128,128], index: 5, kind: output, shape index: {1}, may-alias: {3,5}]
  %6 = xla_tuple %s4, %s5
  %s7 = sld [smem:[#allocation0]]
  $region34: #{center_loss_forward.1} parent=0
    _
  %s9 = ssub.s32 1, %s7
  %s10 = scalar_select 0, %s9, %s7
  $region1: #{center_loss_forward.1} parent=0
    #allocation2 [shape = 'u8[512]{0}', space=smem, size = 0x200, scoped, tag = 'output window, operand 0, single buffered']
    #allocation3 [shape = 's32[1]{0}', space=sflag, size = 0x4, scoped, tag = 'scoped memory for center_loss_forward.1']
    %11 = vsyncpa [#allocation3], 0
    // Predicated region
    $region2: #{center_loss_forward.1} parent=1 // pred_check
      _
    $region3: #{center_loss_forward.1} parent=1 // pred_check_branch
      %13 = sbr.rel (0) target = $region5
    $region4: #{center_loss_forward.1} parent=1 // pred_region
      _
    $region5: #{center_loss_forward.1} parent=1 // pred_fallthru
      _
    // Predicated region
    $region6: #{center_loss_forward.1} parent=1 // pred_check
      _
    $region7: #{center_loss_forward.1} parent=1 // pred_check_branch
      %15 = sbr.rel (0) target = $region9
    $region8: #{center_loss_forward.1} parent=1 // pred_region
      _
    $region9: #{center_loss_forward.1} parent=1 // pred_fallthru
      _
    // Predicated region
    $region10: #{center_loss_forward.1} parent=1 // pred_check
      _
    $region11: #{center_loss_forward.1} parent=1 // pred_check_branch
      %17 = sbr.rel (0) target = $region13
    $region12: #{center_loss_forward.1} parent=1 // pred_region
      _
    $region13: #{center_loss_forward.1} parent=1 // pred_fallthru
      _
    // Predicated region
    $region14: #{center_loss_forward.1} parent=1 // pred_check
      _
    $region15: #{center_loss_forward.1} parent=1 // pred_check_branch
      %19 = sbr.rel (0) target = $region17
    $region16: #{center_loss_forward.1} parent=1 // pred_region
      _
    $region17: #{center_loss_forward.1} parent=1 // pred_fallthru
      _
    %v20 = vld [vmem:[%s3] sm:$0xff]
    %v21 = vld [vmem:[%s3 + $0x8] sm:$0xff]
    %v22 = vld [vmem:[%s3 + $0x10] sm:$0xff]
    %v23 = vld [vmem:[%s3 + $0x18] sm:$0xff]
    %v24 = vld [vmem:[%s3 + $0x20] sm:$0xff]
    %v25 = vld [vmem:[%s3 + $0x28] sm:$0xff]
    %v26 = vld [vmem:[%s3 + $0x30] sm:$0xff]
    %v27 = vld [vmem:[%s3 + $0x38] sm:$0xff]
    %v28 = vld [vmem:[%s3 + $0x40] sm:$0xff]
    %v29 = vld [vmem:[%s3 + $0x48] sm:$0xff]
    %v30 = vld [vmem:[%s3 + $0x50] sm:$0xff]
    %v31 = vld [vmem:[%s3 + $0x58] sm:$0xff]
    %v32 = vld [vmem:[%s3 + $0x60] sm:$0xff]
    %v33 = vld [vmem:[%s3 + $0x68] sm:$0xff]
    %v34 = vld [vmem:[%s3 + $0x70] sm:$0xff]
    %v35 = vld [vmem:[%s3 + $0x78] sm:$0xff]
    %v36 = vld [vmem:[%s2] sm:$0xff]
    %v37 = vld [vmem:[%s2 + $0x8] sm:$0xff]
    %v38 = vld [vmem:[%s2 + $0x10] sm:$0xff]
    %v39 = vld [vmem:[%s2 + $0x18] sm:$0xff]
    %v40 = vld [vmem:[%s2 + $0x20] sm:$0xff]
    %v41 = vld [vmem:[%s2 + $0x28] sm:$0xff]
    %v42 = vld [vmem:[%s2 + $0x30] sm:$0xff]
    %v43 = vld [vmem:[%s2 + $0x38] sm:$0xff]
    %v44 = vld [vmem:[%s2 + $0x40] sm:$0xff]
    %v45 = vld [vmem:[%s2 + $0x48] sm:$0xff]
    %v46 = vld [vmem:[%s2 + $0x50] sm:$0xff]
    %v47 = vld [vmem:[%s2 + $0x58] sm:$0xff]
    %v48 = vld [vmem:[%s2 + $0x60] sm:$0xff]
    %v49 = vld [vmem:[%s2 + $0x68] sm:$0xff]
    %v50 = vld [vmem:[%s2 + $0x70] sm:$0xff]
    %v51 = vld [vmem:[%s2 + $0x78] sm:$0xff]
    %v52 = vlaneseq
    %v53 = vand.u32 %v52, 127
    %v54 = vld [vmem:[%s0] sm:$0xff]
    %v55 = vld [vmem:[%s0 + $0x8] sm:$0xff]
    %v56 = vld [vmem:[%s0 + $0x10] sm:$0xff]
    %v57 = vld [vmem:[%s0 + $0x18] sm:$0xff]
    %v58 = vld [vmem:[%s0 + $0x20] sm:$0xff]
    %v59 = vld [vmem:[%s0 + $0x28] sm:$0xff]
    %v60 = vld [vmem:[%s0 + $0x30] sm:$0xff]
    %v61 = vld [vmem:[%s0 + $0x38] sm:$0xff]
    %v62 = vld [vmem:[%s0 + $0x40] sm:$0xff]
    %v63 = vld [vmem:[%s0 + $0x48] sm:$0xff]
    %v64 = vld [vmem:[%s0 + $0x50] sm:$0xff]
    %v65 = vld [vmem:[%s0 + $0x58] sm:$0xff]
    %v66 = vld [vmem:[%s0 + $0x60] sm:$0xff]
    %v67 = vld [vmem:[%s0 + $0x68] sm:$0xff]
    %v68 = vld [vmem:[%s0 + $0x70] sm:$0xff]
    %v69 = vld [vmem:[%s0 + $0x78] sm:$0xff]
    %70 = vset.pattern.permute.xlu0 0
    %71 = vperm.xlu0 %70, %v54
    %v72 = vpop.permute.xlu0 %71
    %73 = vset.pattern.permute.xlu0 0
    %74 = vperm.xlu0 %73, %v55
    %v75 = vpop.permute.xlu0 %74
    %76 = vset.pattern.permute.xlu0 0
    %77 = vperm.xlu0 %76, %v56
    %v78 = vpop.permute.xlu0 %77
    %79 = vset.pattern.permute.xlu0 0
    %80 = vperm.xlu0 %79, %v57
    %v81 = vpop.permute.xlu0 %80
    %82 = vset.pattern.permute.xlu0 0
    %83 = vperm.xlu0 %82, %v58
    %v84 = vpop.permute.xlu0 %83
    %85 = vset.pattern.permute.xlu0 0
    %86 = vperm.xlu0 %85, %v59
    %v87 = vpop.permute.xlu0 %86
    %88 = vset.pattern.permute.xlu0 0
    %89 = vperm.xlu0 %88, %v60
    %v90 = vpop.permute.xlu0 %89
    %91 = vset.pattern.permute.xlu0 0
    %92 = vperm.xlu0 %91, %v61
    %v93 = vpop.permute.xlu0 %92
    %94 = vset.pattern.permute.xlu0 0
    %95 = vperm.xlu0 %94, %v62
    %v96 = vpop.permute.xlu0 %95
    %97 = vset.pattern.permute.xlu0 0
    %98 = vperm.xlu0 %97, %v63
    %v99 = vpop.permute.xlu0 %98
    %100 = vset.pattern.permute.xlu0 0
    %101 = vperm.xlu0 %100, %v64
    %v102 = vpop.permute.xlu0 %101
    %103 = vset.pattern.permute.xlu0 0
    %104 = vperm.xlu0 %103, %v65
    %v105 = vpop.permute.xlu0 %104
    %106 = vset.pattern.permute.xlu0 0
    %107 = vperm.xlu0 %106, %v66
    %v108 = vpop.permute.xlu0 %107
    %109 = vset.pattern.permute.xlu0 0
    %110 = vperm.xlu0 %109, %v67
    %v111 = vpop.permute.xlu0 %110
    %112 = vset.pattern.permute.xlu0 0
    %113 = vperm.xlu0 %112, %v68
    %v114 = vpop.permute.xlu0 %113
    %115 = vset.pattern.permute.xlu0 0
    %116 = vperm.xlu0 %115, %v69
    %v117 = vpop.permute.xlu0 %116
    %vm118 = vcmp.eq.s32.totalorder %v72, %v53
    %vm119 = vcmp.eq.s32.totalorder %v75, %v53
    %vm120 = vcmp.eq.s32.totalorder %v78, %v53
    %vm121 = vcmp.eq.s32.totalorder %v81, %v53
    %vm122 = vcmp.eq.s32.totalorder %v84, %v53
    %vm123 = vcmp.eq.s32.totalorder %v87, %v53
    %vm124 = vcmp.eq.s32.totalorder %v90, %v53
    %vm125 = vcmp.eq.s32.totalorder %v93, %v53
    %vm126 = vcmp.eq.s32.totalorder %v96, %v53
    %vm127 = vcmp.eq.s32.totalorder %v99, %v53
    %vm128 = vcmp.eq.s32.totalorder %v102, %v53
    %vm129 = vcmp.eq.s32.totalorder %v105, %v53
    %vm130 = vcmp.eq.s32.totalorder %v108, %v53
    %vm131 = vcmp.eq.s32.totalorder %v111, %v53
    %vm132 = vcmp.eq.s32.totalorder %v114, %v53
    %vm133 = vcmp.eq.s32.totalorder %v117, %v53
    %v134 = vsel %vm118, 1, 0
    %v135 = vsel %vm119, 1, 0
    %v136 = vsel %vm120, 1, 0
    %v137 = vsel %vm121, 1, 0
    %v138 = vsel %vm122, 1, 0
    %v139 = vsel %vm123, 1, 0
    %v140 = vsel %vm124, 1, 0
    %v141 = vsel %vm125, 1, 0
    %v142 = vsel %vm126, 1, 0
    %v143 = vsel %vm127, 1, 0
    %v144 = vsel %vm128, 1, 0
    %v145 = vsel %vm129, 1, 0
    %v146 = vsel %vm130, 1, 0
    %v147 = vsel %vm131, 1, 0
    %v148 = vsel %vm132, 1, 0
    %v149 = vsel %vm133, 1, 0
    %v150 = vcvt.s32.f32 %v134
    %v151 = vcvt.s32.f32 %v135
    %v152 = vcvt.s32.f32 %v136
    %v153 = vcvt.s32.f32 %v137
    %v154 = vcvt.s32.f32 %v138
    %v155 = vcvt.s32.f32 %v139
    %v156 = vcvt.s32.f32 %v140
    %v157 = vcvt.s32.f32 %v141
    %v158 = vcvt.s32.f32 %v142
    %v159 = vcvt.s32.f32 %v143
    %v160 = vcvt.s32.f32 %v144
    %v161 = vcvt.s32.f32 %v145
    %v162 = vcvt.s32.f32 %v146
    %v163 = vcvt.s32.f32 %v147
    %v164 = vcvt.s32.f32 %v148
    %v165 = vcvt.s32.f32 %v149
    %166 = vmatprep.subr.mxu0 0.0
    %v167 = vand.u32 %v20, 4294901760
    %168 = vmatpush1.msra.mxu0 %v167
    %169 = vmatprep.subr.mxu0 0.0
    %v170 = vand.u32 %v21, 4294901760
    %171 = vmatpush1.msra.mxu0 %v170
    %172 = vmatprep.subr.mxu0 0.0
    %v173 = vand.u32 %v22, 4294901760
    %174 = vmatpush1.msra.mxu0 %v173
    %175 = vmatprep.subr.mxu0 0.0
    %v176 = vand.u32 %v23, 4294901760
    %177 = vmatpush1.msra.mxu0 %v176
    %178 = vmatprep.subr.mxu0 0.0
    %v179 = vand.u32 %v24, 4294901760
    %180 = vmatpush1.msra.mxu0 %v179
    %181 = vmatprep.subr.mxu0 0.0
    %v182 = vand.u32 %v25, 4294901760
    %183 = vmatpush1.msra.mxu0 %v182
    %184 = vmatprep.subr.mxu0 0.0
    %v185 = vand.u32 %v26, 4294901760
    %186 = vmatpush1.msra.mxu0 %v185
    %187 = vmatprep.subr.mxu0 0.0
    %v188 = vand.u32 %v27, 4294901760
    %189 = vmatpush1.msra.mxu0 %v188
    %190 = vmatprep.subr.mxu0 0.0
    %v191 = vand.u32 %v28, 4294901760
    %192 = vmatpush1.msra.mxu0 %v191
    %193 = vmatprep.subr.mxu0 0.0
    %v194 = vand.u32 %v29, 4294901760
    %195 = vmatpush1.msra.mxu0 %v194
    %196 = vmatprep.subr.mxu0 0.0
    %v197 = vand.u32 %v30, 4294901760
    %198 = vmatpush1.msra.mxu0 %v197
    %199 = vmatprep.subr.mxu0 0.0
    %v200 = vand.u32 %v31, 4294901760
    %201 = vmatpush1.msra.mxu0 %v200
    %202 = vmatprep.subr.mxu0 0.0
    %v203 = vand.u32 %v32, 4294901760
    %204 = vmatpush1.msra.mxu0 %v203
    %205 = vmatprep.subr.mxu0 0.0
    %v206 = vand.u32 %v33, 4294901760
    %207 = vmatpush1.msra.mxu0 %v206
    %208 = vmatprep.subr.mxu0 0.0
    %v209 = vand.u32 %v34, 4294901760
    %210 = vmatpush1.msra.mxu0 %v209
    %211 = vmatprep.subr.mxu0 0.0
    %v212 = vand.u32 %v35, 4294901760
    %213 = vmatpush1.msra.mxu0 %v212
    %214 = vmatprep.subr.mxu0 0.0
    %215 = vmatpush1.msra.mxu0 0.0
    %216 = vmatprep.subr.mxu0 0.0
    %217 = vmatpush1.msra.mxu0 0.0
    %218 = vmatprep.subr.mxu0 0.0
    %219 = vmatpush1.msra.mxu0 0.0
    %220 = vmatprep.subr.mxu0 0.0
    %221 = vmatpush1.msra.mxu0 0.0
    %222 = vmatprep.subr.mxu0 0.0
    %223 = vmatpush1.msra.mxu0 0.0
    %224 = vmatprep.subr.mxu0 0.0
    %225 = vmatpush1.msra.mxu0 0.0
    %226 = vmatprep.subr.mxu0 0.0
    %227 = vmatpush1.msra.mxu0 0.0
    %228 = vmatprep.subr.mxu0 0.0
    %229 = vmatpush1.msra.mxu0 0.0
    %230 = vmatprep.subr.mxu0 0.0
    %231 = vmatpush1.msra.mxu0 0.0
    %232 = vmatprep.subr.mxu0 0.0
    %233 = vmatpush1.msra.mxu0 0.0
    %234 = vmatprep.subr.mxu0 0.0
    %235 = vmatpush1.msra.mxu0 0.0
    %236 = vmatprep.subr.mxu0 0.0
    %237 = vmatpush1.msra.mxu0 0.0
    %238 = vmatprep.subr.mxu0 0.0
    %239 = vmatpush1.msra.mxu0 0.0
    %240 = vmatprep.subr.mxu0 0.0
    %241 = vmatpush1.msra.mxu0 0.0
    %242 = vmatprep.subr.mxu0 0.0
    %243 = vmatpush1.msra.mxu0 0.0
    %244 = vmatprep.subr.mxu0 0.0
    %245 = vmatpush1.msra.mxu0 0.0
    %246 = vmatprep.mubr.f32.mxu0 0.0
    %v247 = vand.u32 %v150, 4294901760
    %v248 = vsub.f32 %v150, %v247
    %v249 = vand.u32 %v248, 4294901760
    %v250 = vsub.f32 %v248, %v249
    %v251 = vand.u32 %v250, 4294901760
    %252 = vmatmul.mubr.f32.gmra.mrb[0].mxu0 %v251
    %v253 = vpop.f32.mrb[0].mxu0
    %v254 = vadd.f32 0.0, %v253
    %v255 = vpop.f32.mrb[0].mxu0
    %256 = vmatprep.mubr.f32.mxu0 0.0
    %v257 = vand.u32 %v151, 4294901760
    %v258 = vsub.f32 %v151, %v257
    %v259 = vand.u32 %v258, 4294901760
    %v260 = vsub.f32 %v258, %v259
    %v261 = vand.u32 %v260, 4294901760
    %262 = vmatmul.mubr.f32.gmra.mrb[0].mxu0 %v261
    %v263 = vpop.f32.mrb[0].mxu0
    %v264 = vadd.f32 0.0, %v263
    %v265 = vpop.f32.mrb[0].mxu0
    %266 = vmatprep.mubr.f32.mxu0 0.0
    %v267 = vand.u32 %v152, 4294901760
    %v268 = vsub.f32 %v152, %v267
    %v269 = vand.u32 %v268, 4294901760
    %v270 = vsub.f32 %v268, %v269
    %v271 = vand.u32 %v270, 4294901760
    %272 = vmatmul.mubr.f32.gmra.mrb[0].mxu0 %v271
    %v273 = vpop.f32.mrb[0].mxu0
    %v274 = vadd.f32 0.0, %v273
    %v275 = vpop.f32.mrb[0].mxu0
    %276 = vmatprep.mubr.f32.mxu0 0.0
    %v277 = vand.u32 %v153, 4294901760
    %v278 = vsub.f32 %v153, %v277
    %v279 = vand.u32 %v278, 4294901760
    %v280 = vsub.f32 %v278, %v279
    %v281 = vand.u32 %v280, 4294901760
    %282 = vmatmul.mubr.f32.gmra.mrb[0].mxu0 %v281
    %v283 = vpop.f32.mrb[0].mxu0
    %v284 = vadd.f32 0.0, %v283
    %v285 = vpop.f32.mrb[0].mxu0
    %286 = vmatprep.mubr.f32.mxu0 0.0
    %v287 = vand.u32 %v154, 4294901760
    %v288 = vsub.f32 %v154, %v287
    %v289 = vand.u32 %v288, 4294901760
    %v290 = vsub.f32 %v288, %v289
    %v291 = vand.u32 %v290, 4294901760
    %292 = vmatmul.mubr.f32.gmra.mrb[0].mxu0 %v291
    %v293 = vpop.f32.mrb[0].mxu0
    %v294 = vadd.f32 0.0, %v293
    %v295 = vpop.f32.mrb[0].mxu0
    %296 = vmatprep.mubr.f32.mxu0 0.0
    %v297 = vand.u32 %v155, 4294901760
    %v298 = vsub.f32 %v155, %v297
    %v299 = vand.u32 %v298, 4294901760
    %v300 = vsub.f32 %v298, %v299
    %v301 = vand.u32 %v300, 4294901760
    %302 = vmatmul.mubr.f32.gmra.mrb[0].mxu0 %v301
    %v303 = vpop.f32.mrb[0].mxu0
    %v304 = vadd.f32 0.0, %v303
    %v305 = vpop.f32.mrb[0].mxu0
    %306 = vmatprep.mubr.f32.mxu0 0.0
    %v307 = vand.u32 %v156, 4294901760
    %v308 = vsub.f32 %v156, %v307
    %v309 = vand.u32 %v308, 4294901760
    %v310 = vsub.f32 %v308, %v309
    %v311 = vand.u32 %v310, 4294901760
    %312 = vmatmul.mubr.f32.gmra.mrb[0].mxu0 %v311
    %v313 = vpop.f32.mrb[0].mxu0
    %v314 = vadd.f32 0.0, %v313
    %v315 = vpop.f32.mrb[0].mxu0
    %316 = vmatprep.mubr.f32.mxu0 0.0
    %v317 = vand.u32 %v157, 4294901760
    %v318 = vsub.f32 %v157, %v317
    %v319 = vand.u32 %v318, 4294901760
    %v320 = vsub.f32 %v318, %v319
    %v321 = vand.u32 %v320, 4294901760
    %322 = vmatmul.mubr.f32.gmra.mrb[0].mxu0 %v321
    %v323 = vpop.f32.mrb[0].mxu0
    %v324 = vadd.f32 0.0, %v323
    %v325 = vpop.f32.mrb[0].mxu0
    %326 = vmatprep.mubr.f32.mxu0 0.0
    %v327 = vand.u32 %v158, 4294901760
    %v328 = vsub.f32 %v158, %v327
    %v329 = vand.u32 %v328, 4294901760
    %v330 = vsub.f32 %v328, %v329
    %v331 = vand.u32 %v330, 4294901760
    %332 = vmatmul.mubr.f32.gmra.mrb[0].mxu0 %v331
    %v333 = vpop.f32.mrb[0].mxu0
    %v334 = vadd.f32 0.0, %v333
    %v335 = vpop.f32.mrb[0].mxu0
    %336 = vmatprep.mubr.f32.mxu0 0.0
    %v337 = vand.u32 %v159, 4294901760
    %v338 = vsub.f32 %v159, %v337
    %v339 = vand.u32 %v338, 4294901760
    %v340 = vsub.f32 %v338, %v339
    %v341 = vand.u32 %v340, 4294901760
    %342 = vmatmul.mubr.f32.gmra.mrb[0].mxu0 %v341
    %v343 = vpop.f32.mrb[0].mxu0
    %v344 = vadd.f32 0.0, %v343
    %v345 = vpop.f32.mrb[0].mxu0
    %346 = vmatprep.mubr.f32.mxu0 0.0
    %v347 = vand.u32 %v160, 4294901760
    %v348 = vsub.f32 %v160, %v347
    %v349 = vand.u32 %v348, 4294901760
    %v350 = vsub.f32 %v348, %v349
    %v351 = vand.u32 %v350, 4294901760
    %352 = vmatmul.mubr.f32.gmra.mrb[0].mxu0 %v351
    %v353 = vpop.f32.mrb[0].mxu0
    %v354 = vadd.f32 0.0, %v353
    %v355 = vpop.f32.mrb[0].mxu0
    %356 = vmatprep.mubr.f32.mxu0 0.0
    %v357 = vand.u32 %v161, 4294901760
    %v358 = vsub.f32 %v161, %v357
    %v359 = vand.u32 %v358, 4294901760
    %v360 = vsub.f32 %v358, %v359
    %v361 = vand.u32 %v360, 4294901760
    %362 = vmatmul.mubr.f32.gmra.mrb[0].mxu0 %v361
    %v363 = vpop.f32.mrb[0].mxu0
    %v364 = vadd.f32 0.0, %v363
    %v365 = vpop.f32.mrb[0].mxu0
    %366 = vmatprep.mubr.f32.mxu0 0.0
    %v367 = vand.u32 %v162, 4294901760
    %v368 = vsub.f32 %v162, %v367
    %v369 = vand.u32 %v368, 4294901760
    %v370 = vsub.f32 %v368, %v369
    %v371 = vand.u32 %v370, 4294901760
    %372 = vmatmul.mubr.f32.gmra.mrb[0].mxu0 %v371
    %v373 = vpop.f32.mrb[0].mxu0
    %v374 = vadd.f32 0.0, %v373
    %v375 = vpop.f32.mrb[0].mxu0
    %376 = vmatprep.mubr.f32.mxu0 0.0
    %v377 = vand.u32 %v163, 4294901760
    %v378 = vsub.f32 %v163, %v377
    %v379 = vand.u32 %v378, 4294901760
    %v380 = vsub.f32 %v378, %v379
    %v381 = vand.u32 %v380, 4294901760
    %382 = vmatmul.mubr.f32.gmra.mrb[0].mxu0 %v381
    %v383 = vpop.f32.mrb[0].mxu0
    %v384 = vadd.f32 0.0, %v383
    %v385 = vpop.f32.mrb[0].mxu0
    %386 = vmatprep.mubr.f32.mxu0 0.0
    %v387 = vand.u32 %v164, 4294901760
    %v388 = vsub.f32 %v164, %v387
    %v389 = vand.u32 %v388, 4294901760
    %v390 = vsub.f32 %v388, %v389
    %v391 = vand.u32 %v390, 4294901760
    %392 = vmatmul.mubr.f32.gmra.mrb[0].mxu0 %v391
    %v393 = vpop.f32.mrb[0].mxu0
    %v394 = vadd.f32 0.0, %v393
    %v395 = vpop.f32.mrb[0].mxu0
    %396 = vmatprep.mubr.f32.mxu0 0.0
    %v397 = vand.u32 %v165, 4294901760
    %v398 = vsub.f32 %v165, %v397
    %v399 = vand.u32 %v398, 4294901760
    %v400 = vsub.f32 %v398, %v399
    %v401 = vand.u32 %v400, 4294901760
    %402 = vmatmul.mubr.f32.gmra.mrb[0].mxu0 %v401
    %v403 = vpop.f32.mrb[0].mxu0
    %v404 = vadd.f32 0.0, %v403
    %v405 = vpop.f32.mrb[0].mxu0
    %406 = vdwg.mxu0
    %407 = vmatprep.subr.mxu0 0.0
    %v408 = vand.u32 %v20, 4294901760
    %v409 = vsub.f32 %v20, %v408
    %v410 = vand.u32 %v409, 4294901760
    %v411 = vsub.f32 %v409, %v410
    %v412 = vand.u32 %v411, 4294901760
    %413 = vmatpush1.msra.mxu0 %v412
    %414 = vmatprep.subr.mxu0 0.0
    %v415 = vand.u32 %v21, 4294901760
    %v416 = vsub.f32 %v21, %v415
    %v417 = vand.u32 %v416, 4294901760
    %v418 = vsub.f32 %v416, %v417
    %v419 = vand.u32 %v418, 4294901760
    %420 = vmatpush1.msra.mxu0 %v419
    %421 = vmatprep.subr.mxu0 0.0
    %v422 = vand.u32 %v22, 4294901760
    %v423 = vsub.f32 %v22, %v422
    %v424 = vand.u32 %v423, 4294901760
    %v425 = vsub.f32 %v423, %v424
    %v426 = vand.u32 %v425, 4294901760
    %427 = vmatpush1.msra.mxu0 %v426
    %428 = vmatprep.subr.mxu0 0.0
    %v429 = vand.u32 %v23, 4294901760
    %v430 = vsub.f32 %v23, %v429
    %v431 = vand.u32 %v430, 4294901760
    %v432 = vsub.f32 %v430, %v431
    %v433 = vand.u32 %v432, 4294901760
    %434 = vmatpush1.msra.mxu0 %v433
    %435 = vmatprep.subr.mxu0 0.0
    %v436 = vand.u32 %v24, 4294901760
    %v437 = vsub.f32 %v24, %v436
    %v438 = vand.u32 %v437, 4294901760
    %v439 = vsub.f32 %v437, %v438
    %v440 = vand.u32 %v439, 4294901760
    %441 = vmatpush1.msra.mxu0 %v440
    %442 = vmatprep.subr.mxu0 0.0
    %v443 = vand.u32 %v25, 4294901760
    %v444 = vsub.f32 %v25, %v443
    %v445 = vand.u32 %v444, 4294901760
    %v446 = vsub.f32 %v444, %v445
    %v447 = vand.u32 %v446, 4294901760
    %448 = vmatpush1.msra.mxu0 %v447
    %449 = vmatprep.subr.mxu0 0.0
    %v450 = vand.u32 %v26, 4294901760
    %v451 = vsub.f32 %v26, %v450
    %v452 = vand.u32 %v451, 4294901760
    %v453 = vsub.f32 %v451, %v452
    %v454 = vand.u32 %v453, 4294901760
    %455 = vmatpush1.msra.mxu0 %v454
    %456 = vmatprep.subr.mxu0 0.0
    %v457 = vand.u32 %v27, 4294901760
    %v458 = vsub.f32 %v27, %v457
    %v459 = vand.u32 %v458, 4294901760
    %v460 = vsub.f32 %v458, %v459
    %v461 = vand.u32 %v460, 4294901760
    %462 = vmatpush1.msra.mxu0 %v461
    %463 = vmatprep.subr.mxu0 0.0
    %v464 = vand.u32 %v28, 4294901760
    %v465 = vsub.f32 %v28, %v464
    %v466 = vand.u32 %v465, 4294901760
    %v467 = vsub.f32 %v465, %v466
    %v468 = vand.u32 %v467, 4294901760
    %469 = vmatpush1.msra.mxu0 %v468
    %470 = vmatprep.subr.mxu0 0.0
    %v471 = vand.u32 %v29, 4294901760
    %v472 = vsub.f32 %v29, %v471
    %v473 = vand.u32 %v472, 4294901760
    %v474 = vsub.f32 %v472, %v473
    %v475 = vand.u32 %v474, 4294901760
    %476 = vmatpush1.msra.mxu0 %v475
    %477 = vmatprep.subr.mxu0 0.0
    %v478 = vand.u32 %v30, 4294901760
    %v479 = vsub.f32 %v30, %v478
    %v480 = vand.u32 %v479, 4294901760
    %v481 = vsub.f32 %v479, %v480
    %v482 = vand.u32 %v481, 4294901760
    %483 = vmatpush1.msra.mxu0 %v482
    %484 = vmatprep.subr.mxu0 0.0
    %v485 = vand.u32 %v31, 4294901760
    %v486 = vsub.f32 %v31, %v485
    %v487 = vand.u32 %v486, 4294901760
    %v488 = vsub.f32 %v486, %v487
    %v489 = vand.u32 %v488, 4294901760
    %490 = vmatpush1.msra.mxu0 %v489
    %491 = vmatprep.subr.mxu0 0.0
    %v492 = vand.u32 %v32, 4294901760
    %v493 = vsub.f32 %v32, %v492
    %v494 = vand.u32 %v493, 4294901760
    %v495 = vsub.f32 %v493, %v494
    %v496 = vand.u32 %v495, 4294901760
    %497 = vmatpush1.msra.mxu0 %v496
    %498 = vmatprep.subr.mxu0 0.0
    %v499 = vand.u32 %v33, 4294901760
    %v500 = vsub.f32 %v33, %v499
    %v501 = vand.u32 %v500, 4294901760
    %v502 = vsub.f32 %v500, %v501
    %v503 = vand.u32 %v502, 4294901760
    %504 = vmatpush1.msra.mxu0 %v503
    %505 = vmatprep.subr.mxu0 0.0
    %v506 = vand.u32 %v34, 4294901760
    %v507 = vsub.f32 %v34, %v506
    %v508 = vand.u32 %v507, 4294901760
    %v509 = vsub.f32 %v507, %v508
    %v510 = vand.u32 %v509, 4294901760
    %511 = vmatpush1.msra.mxu0 %v510
    %512 = vmatprep.subr.mxu0 0.0
    %v513 = vand.u32 %v35, 4294901760
    %v514 = vsub.f32 %v35, %v513
    %v515 = vand.u32 %v514, 4294901760
    %v516 = vsub.f32 %v514, %v515
    %v517 = vand.u32 %v516, 4294901760
    %518 = vmatpush1.msra.mxu0 %v517
    %519 = vmatprep.subr.mxu0 0.0
    %520 = vmatpush1.msra.mxu0 0.0
    %521 = vmatprep.subr.mxu0 0.0
    %522 = vmatpush1.msra.mxu0 0.0
    %523 = vmatprep.subr.mxu0 0.0
    %524 = vmatpush1.msra.mxu0 0.0
    %525 = vmatprep.subr.mxu0 0.0
    %526 = vmatpush1.msra.mxu0 0.0
    %527 = vmatprep.subr.mxu0 0.0
    %528 = vmatpush1.msra.mxu0 0.0
    %529 = vmatprep.subr.mxu0 0.0
    %530 = vmatpush1.msra.mxu0 0.0
    %531 = vmatprep.subr.mxu0 0.0
    %532 = vmatpush1.msra.mxu0 0.0
    %533 = vmatprep.subr.mxu0 0.0
    %534 = vmatpush1.msra.mxu0 0.0
    %535 = vmatprep.subr.mxu0 0.0
    %536 = vmatpush1.msra.mxu0 0.0
    %537 = vmatprep.subr.mxu0 0.0
    %538 = vmatpush1.msra.mxu0 0.0
    %539 = vmatprep.subr.mxu0 0.0
    %540 = vmatpush1.msra.mxu0 0.0
    %541 = vmatprep.subr.mxu0 0.0
    %542 = vmatpush1.msra.mxu0 0.0
    %543 = vmatprep.subr.mxu0 0.0
    %544 = vmatpush1.msra.mxu0 0.0
    %545 = vmatprep.subr.mxu0 0.0
    %546 = vmatpush1.msra.mxu0 0.0
    %547 = vmatprep.subr.mxu0 0.0
    %548 = vmatpush1.msra.mxu0 0.0
    %549 = vmatprep.subr.mxu0 0.0
    %550 = vmatpush1.msra.mxu0 0.0
    %551 = vmatprep.mubr.f32.mxu0 0.0
    %v552 = vand.u32 %v150, 4294901760
    %553 = vmatmul.mubr.f32.gmra.mrb[0].mxu0 %v552
    %v554 = vpop.f32.mrb[0].mxu0
    %v555 = vadd.f32 %v254, %v554
    %v556 = vpop.f32.mrb[0].mxu0
    %557 = vmatprep.mubr.f32.mxu0 0.0
    %v558 = vand.u32 %v151, 4294901760
    %559 = vmatmul.mubr.f32.gmra.mrb[0].mxu0 %v558
    %v560 = vpop.f32.mrb[0].mxu0
    %v561 = vadd.f32 %v264, %v560
    %v562 = vpop.f32.mrb[0].mxu0
    %563 = vmatprep.mubr.f32.mxu0 0.0
    %v564 = vand.u32 %v152, 4294901760
    %565 = vmatmul.mubr.f32.gmra.mrb[0].mxu0 %v564
    %v566 = vpop.f32.mrb[0].mxu0
    %v567 = vadd.f32 %v274, %v566
    %v568 = vpop.f32.mrb[0].mxu0
    %569 = vmatprep.mubr.f32.mxu0 0.0
    %v570 = vand.u32 %v153, 4294901760
    %571 = vmatmul.mubr.f32.gmra.mrb[0].mxu0 %v570
    %v572 = vpop.f32.mrb[0].mxu0
    %v573 = vadd.f32 %v284, %v572
    %v574 = vpop.f32.mrb[0].mxu0
    %575 = vmatprep.mubr.f32.mxu0 0.0
    %v576 = vand.u32 %v154, 4294901760
    %577 = vmatmul.mubr.f32.gmra.mrb[0].mxu0 %v576
    %v578 = vpop.f32.mrb[0].mxu0
    %v579 = vadd.f32 %v294, %v578
    %v580 = vpop.f32.mrb[0].mxu0
    %581 = vmatprep.mubr.f32.mxu0 0.0
    %v582 = vand.u32 %v155, 4294901760
    %583 = vmatmul.mubr.f32.gmra.mrb[0].mxu0 %v582
    %v584 = vpop.f32.mrb[0].mxu0
    %v585 = vadd.f32 %v304, %v584
    %v586 = vpop.f32.mrb[0].mxu0
    %587 = vmatprep.mubr.f32.mxu0 0.0
    %v588 = vand.u32 %v156, 4294901760
    %589 = vmatmul.mubr.f32.gmra.mrb[0].mxu0 %v588
    %v590 = vpop.f32.mrb[0].mxu0
    %v591 = vadd.f32 %v314, %v590
    %v592 = vpop.f32.mrb[0].mxu0
    %593 = vmatprep.mubr.f32.mxu0 0.0
    %v594 = vand.u32 %v157, 4294901760
    %595 = vmatmul.mubr.f32.gmra.mrb[0].mxu0 %v594
    %v596 = vpop.f32.mrb[0].mxu0
    %v597 = vadd.f32 %v324, %v596
    %v598 = vpop.f32.mrb[0].mxu0
    %599 = vmatprep.mubr.f32.mxu0 0.0
    %v600 = vand.u32 %v158, 4294901760
    %601 = vmatmul.mubr.f32.gmra.mrb[0].mxu0 %v600
    %v602 = vpop.f32.mrb[0].mxu0
    %v603 = vadd.f32 %v334, %v602
    %v604 = vpop.f32.mrb[0].mxu0
    %605 = vmatprep.mubr.f32.mxu0 0.0
    %v606 = vand.u32 %v159, 4294901760
    %607 = vmatmul.mubr.f32.gmra.mrb[0].mxu0 %v606
    %v608 = vpop.f32.mrb[0].mxu0
    %v609 = vadd.f32 %v344, %v608
    %v610 = vpop.f32.mrb[0].mxu0
    %611 = vmatprep.mubr.f32.mxu0 0.0
    %v612 = vand.u32 %v160, 4294901760
    %613 = vmatmul.mubr.f32.gmra.mrb[0].mxu0 %v612
    %v614 = vpop.f32.mrb[0].mxu0
    %v615 = vadd.f32 %v354, %v614
    %v616 = vpop.f32.mrb[0].mxu0
    %617 = vmatprep.mubr.f32.mxu0 0.0
    %v618 = vand.u32 %v161, 4294901760
    %619 = vmatmul.mubr.f32.gmra.mrb[0].mxu0 %v618
    %v620 = vpop.f32.mrb[0].mxu0
    %v621 = vadd.f32 %v364, %v620
    %v622 = vpop.f32.mrb[0].mxu0
    %623 = vmatprep.mubr.f32.mxu0 0.0
    %v624 = vand.u32 %v162, 4294901760
    %625 = vmatmul.mubr.f32.gmra.mrb[0].mxu0 %v624
    %v626 = vpop.f32.mrb[0].mxu0
    %v627 = vadd.f32 %v374, %v626
    %v628 = vpop.f32.mrb[0].mxu0
    %629 = vmatprep.mubr.f32.mxu0 0.0
    %v630 = vand.u32 %v163, 4294901760
    %631 = vmatmul.mubr.f32.gmra.mrb[0].mxu0 %v630
    %v632 = vpop.f32.mrb[0].mxu0
    %v633 = vadd.f32 %v384, %v632
    %v634 = vpop.f32.mrb[0].mxu0
    %635 = vmatprep.mubr.f32.mxu0 0.0
    %v636 = vand.u32 %v164, 4294901760
    %637 = vmatmul.mubr.f32.gmra.mrb[0].mxu0 %v636
    %v638 = vpop.f32.mrb[0].mxu0
    %v639 = vadd.f32 %v394, %v638
    %v640 = vpop.f32.mrb[0].mxu0
    %641 = vmatprep.mubr.f32.mxu0 0.0
    %v642 = vand.u32 %v165, 4294901760
    %643 = vmatmul.mubr.f32.gmra.mrb[0].mxu0 %v642
    %v644 = vpop.f32.mrb[0].mxu0
    %v645 = vadd.f32 %v404, %v644
    %v646 = vpop.f32.mrb[0].mxu0
    %647 = vdwg.mxu0
    %648 = vmatprep.subr.mxu0 0.0
    %v649 = vand.u32 %v20, 4294901760
    %v650 = vsub.f32 %v20, %v649
    %651 = vmatpush1.msra.mxu0 %v650
    %652 = vmatprep.subr.mxu0 0.0
    %v653 = vand.u32 %v21, 4294901760
    %v654 = vsub.f32 %v21, %v653
    %655 = vmatpush1.msra.mxu0 %v654
    %656 = vmatprep.subr.mxu0 0.0
    %v657 = vand.u32 %v22, 4294901760
    %v658 = vsub.f32 %v22, %v657
    %659 = vmatpush1.msra.mxu0 %v658
    %660 = vmatprep.subr.mxu0 0.0
    %v661 = vand.u32 %v23, 4294901760
    %v662 = vsub.f32 %v23, %v661
    %663 = vmatpush1.msra.mxu0 %v662
    %664 = vmatprep.subr.mxu0 0.0
    %v665 = vand.u32 %v24, 4294901760
    %v666 = vsub.f32 %v24, %v665
    %667 = vmatpush1.msra.mxu0 %v666
    %668 = vmatprep.subr.mxu0 0.0
    %v669 = vand.u32 %v25, 4294901760
    %v670 = vsub.f32 %v25, %v669
    %671 = vmatpush1.msra.mxu0 %v670
    %672 = vmatprep.subr.mxu0 0.0
    %v673 = vand.u32 %v26, 4294901760
    %v674 = vsub.f32 %v26, %v673
    %675 = vmatpush1.msra.mxu0 %v674
    %676 = vmatprep.subr.mxu0 0.0
    %v677 = vand.u32 %v27, 4294901760
    %v678 = vsub.f32 %v27, %v677
    %679 = vmatpush1.msra.mxu0 %v678
    %680 = vmatprep.subr.mxu0 0.0
    %v681 = vand.u32 %v28, 4294901760
    %v682 = vsub.f32 %v28, %v681
    %683 = vmatpush1.msra.mxu0 %v682
    %684 = vmatprep.subr.mxu0 0.0
    %v685 = vand.u32 %v29, 4294901760
    %v686 = vsub.f32 %v29, %v685
    %687 = vmatpush1.msra.mxu0 %v686
    %688 = vmatprep.subr.mxu0 0.0
    %v689 = vand.u32 %v30, 4294901760
    %v690 = vsub.f32 %v30, %v689
    %691 = vmatpush1.msra.mxu0 %v690
    %692 = vmatprep.subr.mxu0 0.0
    %v693 = vand.u32 %v31, 4294901760
    %v694 = vsub.f32 %v31, %v693
    %695 = vmatpush1.msra.mxu0 %v694
    %696 = vmatprep.subr.mxu0 0.0
    %v697 = vand.u32 %v32, 4294901760
    %v698 = vsub.f32 %v32, %v697
    %699 = vmatpush1.msra.mxu0 %v698
    %700 = vmatprep.subr.mxu0 0.0
    %v701 = vand.u32 %v33, 4294901760
    %v702 = vsub.f32 %v33, %v701
    %703 = vmatpush1.msra.mxu0 %v702
    %704 = vmatprep.subr.mxu0 0.0
    %v705 = vand.u32 %v34, 4294901760
    %v706 = vsub.f32 %v34, %v705
    %707 = vmatpush1.msra.mxu0 %v706
    %708 = vmatprep.subr.mxu0 0.0
    %v709 = vand.u32 %v35, 4294901760
    %v710 = vsub.f32 %v35, %v709
    %711 = vmatpush1.msra.mxu0 %v710
    %712 = vmatprep.subr.mxu0 0.0
    %713 = vmatpush1.msra.mxu0 0.0
    %714 = vmatprep.subr.mxu0 0.0
    %715 = vmatpush1.msra.mxu0 0.0
    %716 = vmatprep.subr.mxu0 0.0
    %717 = vmatpush1.msra.mxu0 0.0
    %718 = vmatprep.subr.mxu0 0.0
    %719 = vmatpush1.msra.mxu0 0.0
    %720 = vmatprep.subr.mxu0 0.0
    %721 = vmatpush1.msra.mxu0 0.0
    %722 = vmatprep.subr.mxu0 0.0
    %723 = vmatpush1.msra.mxu0 0.0
    %724 = vmatprep.subr.mxu0 0.0
    %725 = vmatpush1.msra.mxu0 0.0
    %726 = vmatprep.subr.mxu0 0.0
    %727 = vmatpush1.msra.mxu0 0.0
    %728 = vmatprep.subr.mxu0 0.0
    %729 = vmatpush1.msra.mxu0 0.0
    %730 = vmatprep.subr.mxu0 0.0
    %731 = vmatpush1.msra.mxu0 0.0
    %732 = vmatprep.subr.mxu0 0.0
    %733 = vmatpush1.msra.mxu0 0.0
    %734 = vmatprep.subr.mxu0 0.0
    %735 = vmatpush1.msra.mxu0 0.0
    %736 = vmatprep.subr.mxu0 0.0
    %737 = vmatpush1.msra.mxu0 0.0
    %738 = vmatprep.subr.mxu0 0.0
    %739 = vmatpush1.msra.mxu0 0.0
    %740 = vmatprep.subr.mxu0 0.0
    %741 = vmatpush1.msra.mxu0 0.0
    %742 = vmatprep.subr.mxu0 0.0
    %743 = vmatpush1.msra.mxu0 0.0
    %744 = vmatprep.mubr.f32.mxu0 0.0
    %v745 = vand.u32 %v150, 4294901760
    %v746 = vsub.f32 %v150, %v745
    %747 = vmatmul.mubr.f32.gmra.mrb[0].mxu0 %v746
    %v748 = vpop.f32.mrb[0].mxu0
    %v749 = vadd.f32 %v555, %v748
    %v750 = vpop.f32.mrb[0].mxu0
    %751 = vmatprep.mubr.f32.mxu0 0.0
    %v752 = vand.u32 %v151, 4294901760
    %v753 = vsub.f32 %v151, %v752
    %754 = vmatmul.mubr.f32.gmra.mrb[0].mxu0 %v753
    %v755 = vpop.f32.mrb[0].mxu0
    %v756 = vadd.f32 %v561, %v755
    %v757 = vpop.f32.mrb[0].mxu0
    %758 = vmatprep.mubr.f32.mxu0 0.0
    %v759 = vand.u32 %v152, 4294901760
    %v760 = vsub.f32 %v152, %v759
    %761 = vmatmul.mubr.f32.gmra.mrb[0].mxu0 %v760
    %v762 = vpop.f32.mrb[0].mxu0
    %v763 = vadd.f32 %v567, %v762
    %v764 = vpop.f32.mrb[0].mxu0
    %765 = vmatprep.mubr.f32.mxu0 0.0
    %v766 = vand.u32 %v153, 4294901760
    %v767 = vsub.f32 %v153, %v766
    %768 = vmatmul.mubr.f32.gmra.mrb[0].mxu0 %v767
    %v769 = vpop.f32.mrb[0].mxu0
    %v770 = vadd.f32 %v573, %v769
    %v771 = vpop.f32.mrb[0].mxu0
    %772 = vmatprep.mubr.f32.mxu0 0.0
    %v773 = vand.u32 %v154, 4294901760
    %v774 = vsub.f32 %v154, %v773
    %775 = vmatmul.mubr.f32.gmra.mrb[0].mxu0 %v774
    %v776 = vpop.f32.mrb[0].mxu0
    %v777 = vadd.f32 %v579, %v776
    %v778 = vpop.f32.mrb[0].mxu0
    %779 = vmatprep.mubr.f32.mxu0 0.0
    %v780 = vand.u32 %v155, 4294901760
    %v781 = vsub.f32 %v155, %v780
    %782 = vmatmul.mubr.f32.gmra.mrb[0].mxu0 %v781
    %v783 = vpop.f32.mrb[0].mxu0
    %v784 = vadd.f32 %v585, %v783
    %v785 = vpop.f32.mrb[0].mxu0
    %786 = vmatprep.mubr.f32.mxu0 0.0
    %v787 = vand.u32 %v156, 4294901760
    %v788 = vsub.f32 %v156, %v787
    %789 = vmatmul.mubr.f32.gmra.mrb[0].mxu0 %v788
    %v790 = vpop.f32.mrb[0].mxu0
    %v791 = vadd.f32 %v591, %v790
    %v792 = vpop.f32.mrb[0].mxu0
    %793 = vmatprep.mubr.f32.mxu0 0.0
    %v794 = vand.u32 %v157, 4294901760
    %v795 = vsub.f32 %v157, %v794
    %796 = vmatmul.mubr.f32.gmra.mrb[0].mxu0 %v795
    %v797 = vpop.f32.mrb[0].mxu0
    %v798 = vadd.f32 %v597, %v797
    %v799 = vpop.f32.mrb[0].mxu0
    %800 = vmatprep.mubr.f32.mxu0 0.0
    %v801 = vand.u32 %v158, 4294901760
    %v802 = vsub.f32 %v158, %v801
    %803 = vmatmul.mubr.f32.gmra.mrb[0].mxu0 %v802
    %v804 = vpop.f32.mrb[0].mxu0
    %v805 = vadd.f32 %v603, %v804
    %v806 = vpop.f32.mrb[0].mxu0
    %807 = vmatprep.mubr.f32.mxu0 0.0
    %v808 = vand.u32 %v159, 4294901760
    %v809 = vsub.f32 %v159, %v808
    %810 = vmatmul.mubr.f32.gmra.mrb[0].mxu0 %v809
    %v811 = vpop.f32.mrb[0].mxu0
    %v812 = vadd.f32 %v609, %v811
    %v813 = vpop.f32.mrb[0].mxu0
    %814 = vmatprep.mubr.f32.mxu0 0.0
    %v815 = vand.u32 %v160, 4294901760
    %v816 = vsub.f32 %v160, %v815
    %817 = vmatmul.mubr.f32.gmra.mrb[0].mxu0 %v816
    %v818 = vpop.f32.mrb[0].mxu0
    %v819 = vadd.f32 %v615, %v818
    %v820 = vpop.f32.mrb[0].mxu0
    %821 = vmatprep.mubr.f32.mxu0 0.0
    %v822 = vand.u32 %v161, 4294901760
    %v823 = vsub.f32 %v161, %v822
    %824 = vmatmul.mubr.f32.gmra.mrb[0].mxu0 %v823
    %v825 = vpop.f32.mrb[0].mxu0
    %v826 = vadd.f32 %v621, %v825
    %v827 = vpop.f32.mrb[0].mxu0
    %828 = vmatprep.mubr.f32.mxu0 0.0
    %v829 = vand.u32 %v162, 4294901760
    %v830 = vsub.f32 %v162, %v829
    %831 = vmatmul.mubr.f32.gmra.mrb[0].mxu0 %v830
    %v832 = vpop.f32.mrb[0].mxu0
    %v833 = vadd.f32 %v627, %v832
    %v834 = vpop.f32.mrb[0].mxu0
    %835 = vmatprep.mubr.f32.mxu0 0.0
    %v836 = vand.u32 %v163, 4294901760
    %v837 = vsub.f32 %v163, %v836
    %838 = vmatmul.mubr.f32.gmra.mrb[0].mxu0 %v837
    %v839 = vpop.f32.mrb[0].mxu0
    %v840 = vadd.f32 %v633, %v839
    %v841 = vpop.f32.mrb[0].mxu0
    %842 = vmatprep.mubr.f32.mxu0 0.0
    %v843 = vand.u32 %v164, 4294901760
    %v844 = vsub.f32 %v164, %v843
    %845 = vmatmul.mubr.f32.gmra.mrb[0].mxu0 %v844
    %v846 = vpop.f32.mrb[0].mxu0
    %v847 = vadd.f32 %v639, %v846
    %v848 = vpop.f32.mrb[0].mxu0
    %849 = vmatprep.mubr.f32.mxu0 0.0
    %v850 = vand.u32 %v165, 4294901760
    %v851 = vsub.f32 %v165, %v850
    %852 = vmatmul.mubr.f32.gmra.mrb[0].mxu0 %v851
    %v853 = vpop.f32.mrb[0].mxu0
    %v854 = vadd.f32 %v645, %v853
    %v855 = vpop.f32.mrb[0].mxu0
    %856 = vdwg.mxu0
    %857 = vmatprep.subr.mxu0 0.0
    %v858 = vand.u32 %v20, 4294901760
    %859 = vmatpush1.msra.mxu0 %v858
    %860 = vmatprep.subr.mxu0 0.0
    %v861 = vand.u32 %v21, 4294901760
    %862 = vmatpush1.msra.mxu0 %v861
    %863 = vmatprep.subr.mxu0 0.0
    %v864 = vand.u32 %v22, 4294901760
    %865 = vmatpush1.msra.mxu0 %v864
    %866 = vmatprep.subr.mxu0 0.0
    %v867 = vand.u32 %v23, 4294901760
    %868 = vmatpush1.msra.mxu0 %v867
    %869 = vmatprep.subr.mxu0 0.0
    %v870 = vand.u32 %v24, 4294901760
    %871 = vmatpush1.msra.mxu0 %v870
    %872 = vmatprep.subr.mxu0 0.0
    %v873 = vand.u32 %v25, 4294901760
    %874 = vmatpush1.msra.mxu0 %v873
    %875 = vmatprep.subr.mxu0 0.0
    %v876 = vand.u32 %v26, 4294901760
    %877 = vmatpush1.msra.mxu0 %v876
    %878 = vmatprep.subr.mxu0 0.0
    %v879 = vand.u32 %v27, 4294901760
    %880 = vmatpush1.msra.mxu0 %v879
    %881 = vmatprep.subr.mxu0 0.0
    %v882 = vand.u32 %v28, 4294901760
    %883 = vmatpush1.msra.mxu0 %v882
    %884 = vmatprep.subr.mxu0 0.0
    %v885 = vand.u32 %v29, 4294901760
    %886 = vmatpush1.msra.mxu0 %v885
    %887 = vmatprep.subr.mxu0 0.0
    %v888 = vand.u32 %v30, 4294901760
    %889 = vmatpush1.msra.mxu0 %v888
    %890 = vmatprep.subr.mxu0 0.0
    %v891 = vand.u32 %v31, 4294901760
    %892 = vmatpush1.msra.mxu0 %v891
    %893 = vmatprep.subr.mxu0 0.0
    %v894 = vand.u32 %v32, 4294901760
    %895 = vmatpush1.msra.mxu0 %v894
    %896 = vmatprep.subr.mxu0 0.0
    %v897 = vand.u32 %v33, 4294901760
    %898 = vmatpush1.msra.mxu0 %v897
    %899 = vmatprep.subr.mxu0 0.0
    %v900 = vand.u32 %v34, 4294901760
    %901 = vmatpush1.msra.mxu0 %v900
    %902 = vmatprep.subr.mxu0 0.0
    %v903 = vand.u32 %v35, 4294901760
    %904 = vmatpush1.msra.mxu0 %v903
    %905 = vmatprep.subr.mxu0 0.0
    %906 = vmatpush1.msra.mxu0 0.0
    %907 = vmatprep.subr.mxu0 0.0
    %908 = vmatpush1.msra.mxu0 0.0
    %909 = vmatprep.subr.mxu0 0.0
    %910 = vmatpush1.msra.mxu0 0.0
    %911 = vmatprep.subr.mxu0 0.0
    %912 = vmatpush1.msra.mxu0 0.0
    %913 = vmatprep.subr.mxu0 0.0
    %914 = vmatpush1.msra.mxu0 0.0
    %915 = vmatprep.subr.mxu0 0.0
    %916 = vmatpush1.msra.mxu0 0.0
    %917 = vmatprep.subr.mxu0 0.0
    %918 = vmatpush1.msra.mxu0 0.0
    %919 = vmatprep.subr.mxu0 0.0
    %920 = vmatpush1.msra.mxu0 0.0
    %921 = vmatprep.subr.mxu0 0.0
    %922 = vmatpush1.msra.mxu0 0.0
    %923 = vmatprep.subr.mxu0 0.0
    %924 = vmatpush1.msra.mxu0 0.0
    %925 = vmatprep.subr.mxu0 0.0
    %926 = vmatpush1.msra.mxu0 0.0
    %927 = vmatprep.subr.mxu0 0.0
    %928 = vmatpush1.msra.mxu0 0.0
    %929 = vmatprep.subr.mxu0 0.0
    %930 = vmatpush1.msra.mxu0 0.0
    %931 = vmatprep.subr.mxu0 0.0
    %932 = vmatpush1.msra.mxu0 0.0
    %933 = vmatprep.subr.mxu0 0.0
    %934 = vmatpush1.msra.mxu0 0.0
    %935 = vmatprep.subr.mxu0 0.0
    %936 = vmatpush1.msra.mxu0 0.0
    %937 = vmatprep.mubr.f32.mxu0 0.0
    %v938 = vand.u32 %v150, 4294901760
    %v939 = vsub.f32 %v150, %v938
    %v940 = vand.u32 %v939, 4294901760
    %941 = vmatmul.mubr.f32.gmra.mrb[0].mxu0 %v940
    %v942 = vpop.f32.mrb[0].mxu0
    %v943 = vadd.f32 %v749, %v942
    %v944 = vpop.f32.mrb[0].mxu0
    %945 = vmatprep.mubr.f32.mxu0 0.0
    %v946 = vand.u32 %v151, 4294901760
    %v947 = vsub.f32 %v151, %v946
    %v948 = vand.u32 %v947, 4294901760
    %949 = vmatmul.mubr.f32.gmra.mrb[0].mxu0 %v948
    %v950 = vpop.f32.mrb[0].mxu0
    %v951 = vadd.f32 %v756, %v950
    %v952 = vpop.f32.mrb[0].mxu0
    %953 = vmatprep.mubr.f32.mxu0 0.0
    %v954 = vand.u32 %v152, 4294901760
    %v955 = vsub.f32 %v152, %v954
    %v956 = vand.u32 %v955, 4294901760
    %957 = vmatmul.mubr.f32.gmra.mrb[0].mxu0 %v956
    %v958 = vpop.f32.mrb[0].mxu0
    %v959 = vadd.f32 %v763, %v958
    %v960 = vpop.f32.mrb[0].mxu0
    %961 = vmatprep.mubr.f32.mxu0 0.0
    %v962 = vand.u32 %v153, 4294901760
    %v963 = vsub.f32 %v153, %v962
    %v964 = vand.u32 %v963, 4294901760
    %965 = vmatmul.mubr.f32.gmra.mrb[0].mxu0 %v964
    %v966 = vpop.f32.mrb[0].mxu0
    %v967 = vadd.f32 %v770, %v966
    %v968 = vpop.f32.mrb[0].mxu0
    %969 = vmatprep.mubr.f32.mxu0 0.0
    %v970 = vand.u32 %v154, 4294901760
    %v971 = vsub.f32 %v154, %v970
    %v972 = vand.u32 %v971, 4294901760
    %973 = vmatmul.mubr.f32.gmra.mrb[0].mxu0 %v972
    %v974 = vpop.f32.mrb[0].mxu0
    %v975 = vadd.f32 %v777, %v974
    %v976 = vpop.f32.mrb[0].mxu0
    %977 = vmatprep.mubr.f32.mxu0 0.0
    %v978 = vand.u32 %v155, 4294901760
    %v979 = vsub.f32 %v155, %v978
    %v980 = vand.u32 %v979, 4294901760
    %981 = vmatmul.mubr.f32.gmra.mrb[0].mxu0 %v980
    %v982 = vpop.f32.mrb[0].mxu0
    %v983 = vadd.f32 %v784, %v982
    %v984 = vpop.f32.mrb[0].mxu0
    %985 = vmatprep.mubr.f32.mxu0 0.0
    %v986 = vand.u32 %v156, 4294901760
    %v987 = vsub.f32 %v156, %v986
    %v988 = vand.u32 %v987, 4294901760
    %989 = vmatmul.mubr.f32.gmra.mrb[0].mxu0 %v988
    %v990 = vpop.f32.mrb[0].mxu0
    %v991 = vadd.f32 %v791, %v990
    %v992 = vpop.f32.mrb[0].mxu0
    %993 = vmatprep.mubr.f32.mxu0 0.0
    %v994 = vand.u32 %v157, 4294901760
    %v995 = vsub.f32 %v157, %v994
    %v996 = vand.u32 %v995, 4294901760
    %997 = vmatmul.mubr.f32.gmra.mrb[0].mxu0 %v996
    %v998 = vpop.f32.mrb[0].mxu0
    %v999 = vadd.f32 %v798, %v998
    %v1000 = vpop.f32.mrb[0].mxu0
    %1001 = vmatprep.mubr.f32.mxu0 0.0
    %v1002 = vand.u32 %v158, 4294901760
    %v1003 = vsub.f32 %v158, %v1002
    %v1004 = vand.u32 %v1003, 4294901760
    %1005 = vmatmul.mubr.f32.gmra.mrb[0].mxu0 %v1004
    %v1006 = vpop.f32.mrb[0].mxu0
    %v1007 = vadd.f32 %v805, %v1006
    %v1008 = vpop.f32.mrb[0].mxu0
    %1009 = vmatprep.mubr.f32.mxu0 0.0
    %v1010 = vand.u32 %v159, 4294901760
    %v1011 = vsub.f32 %v159, %v1010
    %v1012 = vand.u32 %v1011, 4294901760
    %1013 = vmatmul.mubr.f32.gmra.mrb[0].mxu0 %v1012
    %v1014 = vpop.f32.mrb[0].mxu0
    %v1015 = vadd.f32 %v812, %v1014
    %v1016 = vpop.f32.mrb[0].mxu0
    %1017 = vmatprep.mubr.f32.mxu0 0.0
    %v1018 = vand.u32 %v160, 4294901760
    %v1019 = vsub.f32 %v160, %v1018
    %v1020 = vand.u32 %v1019, 4294901760
    %1021 = vmatmul.mubr.f32.gmra.mrb[0].mxu0 %v1020
    %v1022 = vpop.f32.mrb[0].mxu0
    %v1023 = vadd.f32 %v819, %v1022
    %v1024 = vpop.f32.mrb[0].mxu0
    %1025 = vmatprep.mubr.f32.mxu0 0.0
    %v1026 = vand.u32 %v161, 4294901760
    %v1027 = vsub.f32 %v161, %v1026
    %v1028 = vand.u32 %v1027, 4294901760
    %1029 = vmatmul.mubr.f32.gmra.mrb[0].mxu0 %v1028
    %v1030 = vpop.f32.mrb[0].mxu0
    %v1031 = vadd.f32 %v826, %v1030
    %v1032 = vpop.f32.mrb[0].mxu0
    %1033 = vmatprep.mubr.f32.mxu0 0.0
    %v1034 = vand.u32 %v162, 4294901760
    %v1035 = vsub.f32 %v162, %v1034
    %v1036 = vand.u32 %v1035, 4294901760
    %1037 = vmatmul.mubr.f32.gmra.mrb[0].mxu0 %v1036
    %v1038 = vpop.f32.mrb[0].mxu0
    %v1039 = vadd.f32 %v833, %v1038
    %v1040 = vpop.f32.mrb[0].mxu0
    %1041 = vmatprep.mubr.f32.mxu0 0.0
    %v1042 = vand.u32 %v163, 4294901760
    %v1043 = vsub.f32 %v163, %v1042
    %v1044 = vand.u32 %v1043, 4294901760
    %1045 = vmatmul.mubr.f32.gmra.mrb[0].mxu0 %v1044
    %v1046 = vpop.f32.mrb[0].mxu0
    %v1047 = vadd.f32 %v840, %v1046
    %v1048 = vpop.f32.mrb[0].mxu0
    %1049 = vmatprep.mubr.f32.mxu0 0.0
    %v1050 = vand.u32 %v164, 4294901760
    %v1051 = vsub.f32 %v164, %v1050
    %v1052 = vand.u32 %v1051, 4294901760
    %1053 = vmatmul.mubr.f32.gmra.mrb[0].mxu0 %v1052
    %v1054 = vpop.f32.mrb[0].mxu0
    %v1055 = vadd.f32 %v847, %v1054
    %v1056 = vpop.f32.mrb[0].mxu0
    %1057 = vmatprep.mubr.f32.mxu0 0.0
    %v1058 = vand.u32 %v165, 4294901760
    %v1059 = vsub.f32 %v165, %v1058
    %v1060 = vand.u32 %v1059, 4294901760
    %1061 = vmatmul.mubr.f32.gmra.mrb[0].mxu0 %v1060
    %v1062 = vpop.f32.mrb[0].mxu0
    %v1063 = vadd.f32 %v854, %v1062
    %v1064 = vpop.f32.mrb[0].mxu0
    %1065 = vdwg.mxu0
    %1066 = vmatprep.subr.mxu0 0.0
    %v1067 = vand.u32 %v20, 4294901760
    %v1068 = vsub.f32 %v20, %v1067
    %v1069 = vand.u32 %v1068, 4294901760
    %1070 = vmatpush1.msra.mxu0 %v1069
    %1071 = vmatprep.subr.mxu0 0.0
    %v1072 = vand.u32 %v21, 4294901760
    %v1073 = vsub.f32 %v21, %v1072
    %v1074 = vand.u32 %v1073, 4294901760
    %1075 = vmatpush1.msra.mxu0 %v1074
    %1076 = vmatprep.subr.mxu0 0.0
    %v1077 = vand.u32 %v22, 4294901760
    %v1078 = vsub.f32 %v22, %v1077
    %v1079 = vand.u32 %v1078, 4294901760
    %1080 = vmatpush1.msra.mxu0 %v1079
    %1081 = vmatprep.subr.mxu0 0.0
    %v1082 = vand.u32 %v23, 4294901760
    %v1083 = vsub.f32 %v23, %v1082
    %v1084 = vand.u32 %v1083, 4294901760
    %1085 = vmatpush1.msra.mxu0 %v1084
    %1086 = vmatprep.subr.mxu0 0.0
    %v1087 = vand.u32 %v24, 4294901760
    %v1088 = vsub.f32 %v24, %v1087
    %v1089 = vand.u32 %v1088, 4294901760
    %1090 = vmatpush1.msra.mxu0 %v1089
    %1091 = vmatprep.subr.mxu0 0.0
    %v1092 = vand.u32 %v25, 4294901760
    %v1093 = vsub.f32 %v25, %v1092
    %v1094 = vand.u32 %v1093, 4294901760
    %1095 = vmatpush1.msra.mxu0 %v1094
    %1096 = vmatprep.subr.mxu0 0.0
    %v1097 = vand.u32 %v26, 4294901760
    %v1098 = vsub.f32 %v26, %v1097
    %v1099 = vand.u32 %v1098, 4294901760
    %1100 = vmatpush1.msra.mxu0 %v1099
    %1101 = vmatprep.subr.mxu0 0.0
    %v1102 = vand.u32 %v27, 4294901760
    %v1103 = vsub.f32 %v27, %v1102
    %v1104 = vand.u32 %v1103, 4294901760
    %1105 = vmatpush1.msra.mxu0 %v1104
    %1106 = vmatprep.subr.mxu0 0.0
    %v1107 = vand.u32 %v28, 4294901760
    %v1108 = vsub.f32 %v28, %v1107
    %v1109 = vand.u32 %v1108, 4294901760
    %1110 = vmatpush1.msra.mxu0 %v1109
    %1111 = vmatprep.subr.mxu0 0.0
    %v1112 = vand.u32 %v29, 4294901760
    %v1113 = vsub.f32 %v29, %v1112
    %v1114 = vand.u32 %v1113, 4294901760
    %1115 = vmatpush1.msra.mxu0 %v1114
    %1116 = vmatprep.subr.mxu0 0.0
    %v1117 = vand.u32 %v30, 4294901760
    %v1118 = vsub.f32 %v30, %v1117
    %v1119 = vand.u32 %v1118, 4294901760
    %1120 = vmatpush1.msra.mxu0 %v1119
    %1121 = vmatprep.subr.mxu0 0.0
    %v1122 = vand.u32 %v31, 4294901760
    %v1123 = vsub.f32 %v31, %v1122
    %v1124 = vand.u32 %v1123, 4294901760
    %1125 = vmatpush1.msra.mxu0 %v1124
    %1126 = vmatprep.subr.mxu0 0.0
    %v1127 = vand.u32 %v32, 4294901760
    %v1128 = vsub.f32 %v32, %v1127
    %v1129 = vand.u32 %v1128, 4294901760
    %1130 = vmatpush1.msra.mxu0 %v1129
    %1131 = vmatprep.subr.mxu0 0.0
    %v1132 = vand.u32 %v33, 4294901760
    %v1133 = vsub.f32 %v33, %v1132
    %v1134 = vand.u32 %v1133, 4294901760
    %1135 = vmatpush1.msra.mxu0 %v1134
    %1136 = vmatprep.subr.mxu0 0.0
    %v1137 = vand.u32 %v34, 4294901760
    %v1138 = vsub.f32 %v34, %v1137
    %v1139 = vand.u32 %v1138, 4294901760
    %1140 = vmatpush1.msra.mxu0 %v1139
    %1141 = vmatprep.subr.mxu0 0.0
    %v1142 = vand.u32 %v35, 4294901760
    %v1143 = vsub.f32 %v35, %v1142
    %v1144 = vand.u32 %v1143, 4294901760
    %1145 = vmatpush1.msra.mxu0 %v1144
    %1146 = vmatprep.subr.mxu0 0.0
    %1147 = vmatpush1.msra.mxu0 0.0
    %1148 = vmatprep.subr.mxu0 0.0
    %1149 = vmatpush1.msra.mxu0 0.0
    %1150 = vmatprep.subr.mxu0 0.0
    %1151 = vmatpush1.msra.mxu0 0.0
    %1152 = vmatprep.subr.mxu0 0.0
    %1153 = vmatpush1.msra.mxu0 0.0
    %1154 = vmatprep.subr.mxu0 0.0
    %1155 = vmatpush1.msra.mxu0 0.0
    %1156 = vmatprep.subr.mxu0 0.0
    %1157 = vmatpush1.msra.mxu0 0.0
    %1158 = vmatprep.subr.mxu0 0.0
    %1159 = vmatpush1.msra.mxu0 0.0
    %1160 = vmatprep.subr.mxu0 0.0
    %1161 = vmatpush1.msra.mxu0 0.0
    %1162 = vmatprep.subr.mxu0 0.0
    %1163 = vmatpush1.msra.mxu0 0.0
    %1164 = vmatprep.subr.mxu0 0.0
    %1165 = vmatpush1.msra.mxu0 0.0
    %1166 = vmatprep.subr.mxu0 0.0
    %1167 = vmatpush1.msra.mxu0 0.0
    %1168 = vmatprep.subr.mxu0 0.0
    %1169 = vmatpush1.msra.mxu0 0.0
    %1170 = vmatprep.subr.mxu0 0.0
    %1171 = vmatpush1.msra.mxu0 0.0
    %1172 = vmatprep.subr.mxu0 0.0
    %1173 = vmatpush1.msra.mxu0 0.0
    %1174 = vmatprep.subr.mxu0 0.0
    %1175 = vmatpush1.msra.mxu0 0.0
    %1176 = vmatprep.subr.mxu0 0.0
    %1177 = vmatpush1.msra.mxu0 0.0
    %1178 = vmatprep.mubr.f32.mxu0 0.0
    %v1179 = vand.u32 %v150, 4294901760
    %1180 = vmatmul.mubr.f32.gmra.mrb[0].mxu0 %v1179
    %v1181 = vpop.f32.mrb[0].mxu0
    %v1182 = vadd.f32 %v943, %v1181
    %v1183 = vpop.f32.mrb[0].mxu0
    %1184 = vmatprep.mubr.f32.mxu0 0.0
    %v1185 = vand.u32 %v151, 4294901760
    %1186 = vmatmul.mubr.f32.gmra.mrb[0].mxu0 %v1185
    %v1187 = vpop.f32.mrb[0].mxu0
    %v1188 = vadd.f32 %v951, %v1187
    %v1189 = vpop.f32.mrb[0].mxu0
    %1190 = vmatprep.mubr.f32.mxu0 0.0
    %v1191 = vand.u32 %v152, 4294901760
    %1192 = vmatmul.mubr.f32.gmra.mrb[0].mxu0 %v1191
    %v1193 = vpop.f32.mrb[0].mxu0
    %v1194 = vadd.f32 %v959, %v1193
    %v1195 = vpop.f32.mrb[0].mxu0
    %1196 = vmatprep.mubr.f32.mxu0 0.0
    %v1197 = vand.u32 %v153, 4294901760
    %1198 = vmatmul.mubr.f32.gmra.mrb[0].mxu0 %v1197
    %v1199 = vpop.f32.mrb[0].mxu0
    %v1200 = vadd.f32 %v967, %v1199
    %v1201 = vpop.f32.mrb[0].mxu0
    %1202 = vmatprep.mubr.f32.mxu0 0.0
    %v1203 = vand.u32 %v154, 4294901760
    %1204 = vmatmul.mubr.f32.gmra.mrb[0].mxu0 %v1203
    %v1205 = vpop.f32.mrb[0].mxu0
    %v1206 = vadd.f32 %v975, %v1205
    %v1207 = vpop.f32.mrb[0].mxu0
    %1208 = vmatprep.mubr.f32.mxu0 0.0
    %v1209 = vand.u32 %v155, 4294901760
    %1210 = vmatmul.mubr.f32.gmra.mrb[0].mxu0 %v1209
    %v1211 = vpop.f32.mrb[0].mxu0
    %v1212 = vadd.f32 %v983, %v1211
    %v1213 = vpop.f32.mrb[0].mxu0
    %1214 = vmatprep.mubr.f32.mxu0 0.0
    %v1215 = vand.u32 %v156, 4294901760
    %1216 = vmatmul.mubr.f32.gmra.mrb[0].mxu0 %v1215
    %v1217 = vpop.f32.mrb[0].mxu0
    %v1218 = vadd.f32 %v991, %v1217
    %v1219 = vpop.f32.mrb[0].mxu0
    %1220 = vmatprep.mubr.f32.mxu0 0.0
    %v1221 = vand.u32 %v157, 4294901760
    %1222 = vmatmul.mubr.f32.gmra.mrb[0].mxu0 %v1221
    %v1223 = vpop.f32.mrb[0].mxu0
    %v1224 = vadd.f32 %v999, %v1223
    %v1225 = vpop.f32.mrb[0].mxu0
    %1226 = vmatprep.mubr.f32.mxu0 0.0
    %v1227 = vand.u32 %v158, 4294901760
    %1228 = vmatmul.mubr.f32.gmra.mrb[0].mxu0 %v1227
    %v1229 = vpop.f32.mrb[0].mxu0
    %v1230 = vadd.f32 %v1007, %v1229
    %v1231 = vpop.f32.mrb[0].mxu0
    %1232 = vmatprep.mubr.f32.mxu0 0.0
    %v1233 = vand.u32 %v159, 4294901760
    %1234 = vmatmul.mubr.f32.gmra.mrb[0].mxu0 %v1233
    %v1235 = vpop.f32.mrb[0].mxu0
    %v1236 = vadd.f32 %v1015, %v1235
    %v1237 = vpop.f32.mrb[0].mxu0
    %1238 = vmatprep.mubr.f32.mxu0 0.0
    %v1239 = vand.u32 %v160, 4294901760
    %1240 = vmatmul.mubr.f32.gmra.mrb[0].mxu0 %v1239
    %v1241 = vpop.f32.mrb[0].mxu0
    %v1242 = vadd.f32 %v1023, %v1241
    %v1243 = vpop.f32.mrb[0].mxu0
    %1244 = vmatprep.mubr.f32.mxu0 0.0
    %v1245 = vand.u32 %v161, 4294901760
    %1246 = vmatmul.mubr.f32.gmra.mrb[0].mxu0 %v1245
    %v1247 = vpop.f32.mrb[0].mxu0
    %v1248 = vadd.f32 %v1031, %v1247
    %v1249 = vpop.f32.mrb[0].mxu0
    %1250 = vmatprep.mubr.f32.mxu0 0.0
    %v1251 = vand.u32 %v162, 4294901760
    %1252 = vmatmul.mubr.f32.gmra.mrb[0].mxu0 %v1251
    %v1253 = vpop.f32.mrb[0].mxu0
    %v1254 = vadd.f32 %v1039, %v1253
    %v1255 = vpop.f32.mrb[0].mxu0
    %1256 = vmatprep.mubr.f32.mxu0 0.0
    %v1257 = vand.u32 %v163, 4294901760
    %1258 = vmatmul.mubr.f32.gmra.mrb[0].mxu0 %v1257
    %v1259 = vpop.f32.mrb[0].mxu0
    %v1260 = vadd.f32 %v1047, %v1259
    %v1261 = vpop.f32.mrb[0].mxu0
    %1262 = vmatprep.mubr.f32.mxu0 0.0
    %v1263 = vand.u32 %v164, 4294901760
    %1264 = vmatmul.mubr.f32.gmra.mrb[0].mxu0 %v1263
    %v1265 = vpop.f32.mrb[0].mxu0
    %v1266 = vadd.f32 %v1055, %v1265
    %v1267 = vpop.f32.mrb[0].mxu0
    %1268 = vmatprep.mubr.f32.mxu0 0.0
    %v1269 = vand.u32 %v165, 4294901760
    %1270 = vmatmul.mubr.f32.gmra.mrb[0].mxu0 %v1269
    %v1271 = vpop.f32.mrb[0].mxu0
    %v1272 = vadd.f32 %v1063, %v1271
    %v1273 = vpop.f32.mrb[0].mxu0
    %1274 = vdwg.mxu0
    %1275 = vmatprep.subr.mxu0 0.0
    %v1276 = vand.u32 %v20, 4294901760
    %1277 = vmatpush1.msra.mxu0 %v1276
    %1278 = vmatprep.subr.mxu0 0.0
    %v1279 = vand.u32 %v21, 4294901760
    %1280 = vmatpush1.msra.mxu0 %v1279
    %1281 = vmatprep.subr.mxu0 0.0
    %v1282 = vand.u32 %v22, 4294901760
    %1283 = vmatpush1.msra.mxu0 %v1282
    %1284 = vmatprep.subr.mxu0 0.0
    %v1285 = vand.u32 %v23, 4294901760
    %1286 = vmatpush1.msra.mxu0 %v1285
    %1287 = vmatprep.subr.mxu0 0.0
    %v1288 = vand.u32 %v24, 4294901760
    %1289 = vmatpush1.msra.mxu0 %v1288
    %1290 = vmatprep.subr.mxu0 0.0
    %v1291 = vand.u32 %v25, 4294901760
    %1292 = vmatpush1.msra.mxu0 %v1291
    %1293 = vmatprep.subr.mxu0 0.0
    %v1294 = vand.u32 %v26, 4294901760
    %1295 = vmatpush1.msra.mxu0 %v1294
    %1296 = vmatprep.subr.mxu0 0.0
    %v1297 = vand.u32 %v27, 4294901760
    %1298 = vmatpush1.msra.mxu0 %v1297
    %1299 = vmatprep.subr.mxu0 0.0
    %v1300 = vand.u32 %v28, 4294901760
    %1301 = vmatpush1.msra.mxu0 %v1300
    %1302 = vmatprep.subr.mxu0 0.0
    %v1303 = vand.u32 %v29, 4294901760
    %1304 = vmatpush1.msra.mxu0 %v1303
    %1305 = vmatprep.subr.mxu0 0.0
    %v1306 = vand.u32 %v30, 4294901760
    %1307 = vmatpush1.msra.mxu0 %v1306
    %1308 = vmatprep.subr.mxu0 0.0
    %v1309 = vand.u32 %v31, 4294901760
    %1310 = vmatpush1.msra.mxu0 %v1309
    %1311 = vmatprep.subr.mxu0 0.0
    %v1312 = vand.u32 %v32, 4294901760
    %1313 = vmatpush1.msra.mxu0 %v1312
    %1314 = vmatprep.subr.mxu0 0.0
    %v1315 = vand.u32 %v33, 4294901760
    %1316 = vmatpush1.msra.mxu0 %v1315
    %1317 = vmatprep.subr.mxu0 0.0
    %v1318 = vand.u32 %v34, 4294901760
    %1319 = vmatpush1.msra.mxu0 %v1318
    %1320 = vmatprep.subr.mxu0 0.0
    %v1321 = vand.u32 %v35, 4294901760
    %1322 = vmatpush1.msra.mxu0 %v1321
    %1323 = vmatprep.subr.mxu0 0.0
    %1324 = vmatpush1.msra.mxu0 0.0
    %1325 = vmatprep.subr.mxu0 0.0
    %1326 = vmatpush1.msra.mxu0 0.0
    %1327 = vmatprep.subr.mxu0 0.0
    %1328 = vmatpush1.msra.mxu0 0.0
    %1329 = vmatprep.subr.mxu0 0.0
    %1330 = vmatpush1.msra.mxu0 0.0
    %1331 = vmatprep.subr.mxu0 0.0
    %1332 = vmatpush1.msra.mxu0 0.0
    %1333 = vmatprep.subr.mxu0 0.0
    %1334 = vmatpush1.msra.mxu0 0.0
    %1335 = vmatprep.subr.mxu0 0.0
    %1336 = vmatpush1.msra.mxu0 0.0
    %1337 = vmatprep.subr.mxu0 0.0
    %1338 = vmatpush1.msra.mxu0 0.0
    %1339 = vmatprep.subr.mxu0 0.0
    %1340 = vmatpush1.msra.mxu0 0.0
    %1341 = vmatprep.subr.mxu0 0.0
    %1342 = vmatpush1.msra.mxu0 0.0
    %1343 = vmatprep.subr.mxu0 0.0
    %1344 = vmatpush1.msra.mxu0 0.0
    %1345 = vmatprep.subr.mxu0 0.0
    %1346 = vmatpush1.msra.mxu0 0.0
    %1347 = vmatprep.subr.mxu0 0.0
    %1348 = vmatpush1.msra.mxu0 0.0
    %1349 = vmatprep.subr.mxu0 0.0
    %1350 = vmatpush1.msra.mxu0 0.0
    %1351 = vmatprep.subr.mxu0 0.0
    %1352 = vmatpush1.msra.mxu0 0.0
    %1353 = vmatprep.subr.mxu0 0.0
    %1354 = vmatpush1.msra.mxu0 0.0
    %1355 = vmatprep.mubr.f32.mxu0 0.0
    %v1356 = vand.u32 %v150, 4294901760
    %1357 = vmatmul.mubr.f32.gmra.mrb[0].mxu0 %v1356
    %v1358 = vpop.f32.mrb[0].mxu0
    %v1359 = vadd.f32 %v1182, %v1358
    %v1360 = vpop.f32.mrb[0].mxu0
    %1361 = vmatprep.mubr.f32.mxu0 0.0
    %v1362 = vand.u32 %v151, 4294901760
    %1363 = vmatmul.mubr.f32.gmra.mrb[0].mxu0 %v1362
    %v1364 = vpop.f32.mrb[0].mxu0
    %v1365 = vadd.f32 %v1188, %v1364
    %v1366 = vpop.f32.mrb[0].mxu0
    %1367 = vmatprep.mubr.f32.mxu0 0.0
    %v1368 = vand.u32 %v152, 4294901760
    %1369 = vmatmul.mubr.f32.gmra.mrb[0].mxu0 %v1368
    %v1370 = vpop.f32.mrb[0].mxu0
    %v1371 = vadd.f32 %v1194, %v1370
    %v1372 = vpop.f32.mrb[0].mxu0
    %1373 = vmatprep.mubr.f32.mxu0 0.0
    %v1374 = vand.u32 %v153, 4294901760
    %1375 = vmatmul.mubr.f32.gmra.mrb[0].mxu0 %v1374
    %v1376 = vpop.f32.mrb[0].mxu0
    %v1377 = vadd.f32 %v1200, %v1376
    %v1378 = vpop.f32.mrb[0].mxu0
    %1379 = vmatprep.mubr.f32.mxu0 0.0
    %v1380 = vand.u32 %v154, 4294901760
    %1381 = vmatmul.mubr.f32.gmra.mrb[0].mxu0 %v1380
    %v1382 = vpop.f32.mrb[0].mxu0
    %v1383 = vadd.f32 %v1206, %v1382
    %v1384 = vpop.f32.mrb[0].mxu0
    %1385 = vmatprep.mubr.f32.mxu0 0.0
    %v1386 = vand.u32 %v155, 4294901760
    %1387 = vmatmul.mubr.f32.gmra.mrb[0].mxu0 %v1386
    %v1388 = vpop.f32.mrb[0].mxu0
    %v1389 = vadd.f32 %v1212, %v1388
    %v1390 = vpop.f32.mrb[0].mxu0
    %1391 = vmatprep.mubr.f32.mxu0 0.0
    %v1392 = vand.u32 %v156, 4294901760
    %1393 = vmatmul.mubr.f32.gmra.mrb[0].mxu0 %v1392
    %v1394 = vpop.f32.mrb[0].mxu0
    %v1395 = vadd.f32 %v1218, %v1394
    %v1396 = vpop.f32.mrb[0].mxu0
    %1397 = vmatprep.mubr.f32.mxu0 0.0
    %v1398 = vand.u32 %v157, 4294901760
    %1399 = vmatmul.mubr.f32.gmra.mrb[0].mxu0 %v1398
    %v1400 = vpop.f32.mrb[0].mxu0
    %v1401 = vadd.f32 %v1224, %v1400
    %v1402 = vpop.f32.mrb[0].mxu0
    %1403 = vmatprep.mubr.f32.mxu0 0.0
    %v1404 = vand.u32 %v158, 4294901760
    %1405 = vmatmul.mubr.f32.gmra.mrb[0].mxu0 %v1404
    %v1406 = vpop.f32.mrb[0].mxu0
    %v1407 = vadd.f32 %v1230, %v1406
    %v1408 = vpop.f32.mrb[0].mxu0
    %1409 = vmatprep.mubr.f32.mxu0 0.0
    %v1410 = vand.u32 %v159, 4294901760
    %1411 = vmatmul.mubr.f32.gmra.mrb[0].mxu0 %v1410
    %v1412 = vpop.f32.mrb[0].mxu0
    %v1413 = vadd.f32 %v1236, %v1412
    %v1414 = vpop.f32.mrb[0].mxu0
    %1415 = vmatprep.mubr.f32.mxu0 0.0
    %v1416 = vand.u32 %v160, 4294901760
    %1417 = vmatmul.mubr.f32.gmra.mrb[0].mxu0 %v1416
    %v1418 = vpop.f32.mrb[0].mxu0
    %v1419 = vadd.f32 %v1242, %v1418
    %v1420 = vpop.f32.mrb[0].mxu0
    %1421 = vmatprep.mubr.f32.mxu0 0.0
    %v1422 = vand.u32 %v161, 4294901760
    %1423 = vmatmul.mubr.f32.gmra.mrb[0].mxu0 %v1422
    %v1424 = vpop.f32.mrb[0].mxu0
    %v1425 = vadd.f32 %v1248, %v1424
    %v1426 = vpop.f32.mrb[0].mxu0
    %1427 = vmatprep.mubr.f32.mxu0 0.0
    %v1428 = vand.u32 %v162, 4294901760
    %1429 = vmatmul.mubr.f32.gmra.mrb[0].mxu0 %v1428
    %v1430 = vpop.f32.mrb[0].mxu0
    %v1431 = vadd.f32 %v1254, %v1430
    %v1432 = vpop.f32.mrb[0].mxu0
    %1433 = vmatprep.mubr.f32.mxu0 0.0
    %v1434 = vand.u32 %v163, 4294901760
    %1435 = vmatmul.mubr.f32.gmra.mrb[0].mxu0 %v1434
    %v1436 = vpop.f32.mrb[0].mxu0
    %v1437 = vadd.f32 %v1260, %v1436
    %v1438 = vpop.f32.mrb[0].mxu0
    %1439 = vmatprep.mubr.f32.mxu0 0.0
    %v1440 = vand.u32 %v164, 4294901760
    %1441 = vmatmul.mubr.f32.gmra.mrb[0].mxu0 %v1440
    %v1442 = vpop.f32.mrb[0].mxu0
    %v1443 = vadd.f32 %v1266, %v1442
    %v1444 = vpop.f32.mrb[0].mxu0
    %1445 = vmatprep.mubr.f32.mxu0 0.0
    %v1446 = vand.u32 %v165, 4294901760
    %1447 = vmatmul.mubr.f32.gmra.mrb[0].mxu0 %v1446
    %v1448 = vpop.f32.mrb[0].mxu0
    %v1449 = vadd.f32 %v1272, %v1448
    %v1450 = vpop.f32.mrb[0].mxu0
    %1451 = vdwg.mxu0
    %v1452 = vsub.f32 %v36, %v1359
    %v1453 = vsub.f32 %v37, %v1365
    %v1454 = vsub.f32 %v38, %v1371
    %v1455 = vsub.f32 %v39, %v1377
    %v1456 = vsub.f32 %v40, %v1383
    %v1457 = vsub.f32 %v41, %v1389
    %v1458 = vsub.f32 %v42, %v1395
    %v1459 = vsub.f32 %v43, %v1401
    %v1460 = vsub.f32 %v44, %v1407
    %v1461 = vsub.f32 %v45, %v1413
    %v1462 = vsub.f32 %v46, %v1419
    %v1463 = vsub.f32 %v47, %v1425
    %v1464 = vsub.f32 %v48, %v1431
    %v1465 = vsub.f32 %v49, %v1437
    %v1466 = vsub.f32 %v50, %v1443
    %v1467 = vsub.f32 %v51, %v1449
    %v1468 = vmul.f32 %v1452, %v1452
    %v1469 = vmul.f32 %v1453, %v1453
    %v1470 = vmul.f32 %v1454, %v1454
    %v1471 = vmul.f32 %v1455, %v1455
    %v1472 = vmul.f32 %v1456, %v1456
    %v1473 = vmul.f32 %v1457, %v1457
    %v1474 = vmul.f32 %v1458, %v1458
    %v1475 = vmul.f32 %v1459, %v1459
    %v1476 = vmul.f32 %v1460, %v1460
    %v1477 = vmul.f32 %v1461, %v1461
    %v1478 = vmul.f32 %v1462, %v1462
    %v1479 = vmul.f32 %v1463, %v1463
    %v1480 = vmul.f32 %v1464, %v1464
    %v1481 = vmul.f32 %v1465, %v1465
    %v1482 = vmul.f32 %v1466, %v1466
    %v1483 = vmul.f32 %v1467, %v1467
    %v1484 = vadd.f32 %v1468, %v1469
    %v1485 = vadd.f32 %v1484, %v1470
    %v1486 = vadd.f32 %v1485, %v1471
    %v1487 = vadd.f32 %v1486, %v1472
    %v1488 = vadd.f32 %v1487, %v1473
    %v1489 = vadd.f32 %v1488, %v1474
    %v1490 = vadd.f32 %v1489, %v1475
    %v1491 = vadd.f32 %v1490, %v1476
    %v1492 = vadd.f32 %v1491, %v1477
    %v1493 = vadd.f32 %v1492, %v1478
    %v1494 = vadd.f32 %v1493, %v1479
    %v1495 = vadd.f32 %v1494, %v1480
    %v1496 = vadd.f32 %v1495, %v1481
    %v1497 = vadd.f32 %v1496, %v1482
    %v1498 = vadd.f32 %v1497, %v1483
    %1499 = vadd.xlane.f32.xlu0 %v1498
    %v1500 = vpop.xlane.xlu0 %1499
    %v1501 = vrot.slane %v1500, 4
    %v1502 = vadd.f32 %v1500, %v1501
    %v1503 = vrot.slane %v1502, 2
    %v1504 = vadd.f32 %v1502, %v1503
    %v1505 = vrot.slane %v1504, 1
    %v1506 = vadd.f32 %v1504, %v1505
    %s1507 = vtos %v1506
    %s1508 = scalar_lea.smem [#allocation2], 0
    %1509 = sst [smem:[%s1508]] %s1507
    %v1510 = vlaneseq
    %v1511 = vshrl.u32 %v1510, 7
    %v1512 = vadd.s32 %v1511, 8
    %v1513 = vadd.s32 %v1511, 16
    %v1514 = vadd.s32 %v1511, 24
    %v1515 = vadd.s32 %v1511, 32
    %v1516 = vadd.s32 %v1511, 40
    %v1517 = vadd.s32 %v1511, 48
    %v1518 = vadd.s32 %v1511, 56
    %v1519 = vadd.s32 %v1511, 64
    %v1520 = vadd.s32 %v1511, 72
    %v1521 = vadd.s32 %v1511, 80
    %v1522 = vadd.s32 %v1511, 88
    %v1523 = vadd.s32 %v1511, 96
    %v1524 = vadd.s32 %v1511, 104
    %v1525 = vadd.s32 %v1511, 112
    %v1526 = vadd.s32 %v1511, 120
    %v1527 = vld [vmem:[%s1] sm:$0x1]
    %v1528 = vlaneseq
    %v1529 = vshrl.u32 %v1528, 7
    %v1530 = vsub.s32 0, %v1529
    %v1531 = vrot.slane %v1527, %v1530
    %vm1532 = vcmp.eq.s32.totalorder %v1531, %v1511
    %vm1533 = vcmp.eq.s32.totalorder %v1531, %v1512
    %vm1534 = vcmp.eq.s32.totalorder %v1531, %v1513
    %vm1535 = vcmp.eq.s32.totalorder %v1531, %v1514
    %vm1536 = vcmp.eq.s32.totalorder %v1531, %v1515
    %vm1537 = vcmp.eq.s32.totalorder %v1531, %v1516
    %vm1538 = vcmp.eq.s32.totalorder %v1531, %v1517
    %vm1539 = vcmp.eq.s32.totalorder %v1531, %v1518
    %vm1540 = vcmp.eq.s32.totalorder %v1531, %v1519
    %vm1541 = vcmp.eq.s32.totalorder %v1531, %v1520
    %vm1542 = vcmp.eq.s32.totalorder %v1531, %v1521
    %vm1543 = vcmp.eq.s32.totalorder %v1531, %v1522
    %vm1544 = vcmp.eq.s32.totalorder %v1531, %v1523
    %vm1545 = vcmp.eq.s32.totalorder %v1531, %v1524
    %vm1546 = vcmp.eq.s32.totalorder %v1531, %v1525
    %vm1547 = vcmp.eq.s32.totalorder %v1531, %v1526
    %v1548 = vsel %vm1532, 1, 0
    %v1549 = vsel %vm1533, 1, 0
    %v1550 = vsel %vm1534, 1, 0
    %v1551 = vsel %vm1535, 1, 0
    %v1552 = vsel %vm1536, 1, 0
    %v1553 = vsel %vm1537, 1, 0
    %v1554 = vsel %vm1538, 1, 0
    %v1555 = vsel %vm1539, 1, 0
    %v1556 = vsel %vm1540, 1, 0
    %v1557 = vsel %vm1541, 1, 0
    %v1558 = vsel %vm1542, 1, 0
    %v1559 = vsel %vm1543, 1, 0
    %v1560 = vsel %vm1544, 1, 0
    %v1561 = vsel %vm1545, 1, 0
    %v1562 = vsel %vm1546, 1, 0
    %v1563 = vsel %vm1547, 1, 0
    %v1564 = vcvt.s32.f32 %v1548
    %v1565 = vcvt.s32.f32 %v1549
    %v1566 = vcvt.s32.f32 %v1550
    %v1567 = vcvt.s32.f32 %v1551
    %v1568 = vcvt.s32.f32 %v1552
    %v1569 = vcvt.s32.f32 %v1553
    %v1570 = vcvt.s32.f32 %v1554
    %v1571 = vcvt.s32.f32 %v1555
    %v1572 = vcvt.s32.f32 %v1556
    %v1573 = vcvt.s32.f32 %v1557
    %v1574 = vcvt.s32.f32 %v1558
    %v1575 = vcvt.s32.f32 %v1559
    %v1576 = vcvt.s32.f32 %v1560
    %v1577 = vcvt.s32.f32 %v1561
    %v1578 = vcvt.s32.f32 %v1562
    %v1579 = vcvt.s32.f32 %v1563
    %1580 = vmatprep.subr.mxu0 0.0
    %v1581 = vand.u32 %v1452, 4294901760
    %1582 = vmatpush1.msra.mxu0 %v1581
    %1583 = vmatprep.subr.mxu0 0.0
    %v1584 = vand.u32 %v1453, 4294901760
    %1585 = vmatpush1.msra.mxu0 %v1584
    %1586 = vmatprep.subr.mxu0 0.0
    %v1587 = vand.u32 %v1454, 4294901760
    %1588 = vmatpush1.msra.mxu0 %v1587
    %1589 = vmatprep.subr.mxu0 0.0
    %v1590 = vand.u32 %v1455, 4294901760
    %1591 = vmatpush1.msra.mxu0 %v1590
    %1592 = vmatprep.subr.mxu0 0.0
    %v1593 = vand.u32 %v1456, 4294901760
    %1594 = vmatpush1.msra.mxu0 %v1593
    %1595 = vmatprep.subr.mxu0 0.0
    %v1596 = vand.u32 %v1457, 4294901760
    %1597 = vmatpush1.msra.mxu0 %v1596
    %1598 = vmatprep.subr.mxu0 0.0
    %v1599 = vand.u32 %v1458, 4294901760
    %1600 = vmatpush1.msra.mxu0 %v1599
    %1601 = vmatprep.subr.mxu0 0.0
    %v1602 = vand.u32 %v1459, 4294901760
    %1603 = vmatpush1.msra.mxu0 %v1602
    %1604 = vmatprep.subr.mxu0 0.0
    %v1605 = vand.u32 %v1460, 4294901760
    %1606 = vmatpush1.msra.mxu0 %v1605
    %1607 = vmatprep.subr.mxu0 0.0
    %v1608 = vand.u32 %v1461, 4294901760
    %1609 = vmatpush1.msra.mxu0 %v1608
    %1610 = vmatprep.subr.mxu0 0.0
    %v1611 = vand.u32 %v1462, 4294901760
    %1612 = vmatpush1.msra.mxu0 %v1611
    %1613 = vmatprep.subr.mxu0 0.0
    %v1614 = vand.u32 %v1463, 4294901760
    %1615 = vmatpush1.msra.mxu0 %v1614
    %1616 = vmatprep.subr.mxu0 0.0
    %v1617 = vand.u32 %v1464, 4294901760
    %1618 = vmatpush1.msra.mxu0 %v1617
    %1619 = vmatprep.subr.mxu0 0.0
    %v1620 = vand.u32 %v1465, 4294901760
    %1621 = vmatpush1.msra.mxu0 %v1620
    %1622 = vmatprep.subr.mxu0 0.0
    %v1623 = vand.u32 %v1466, 4294901760
    %1624 = vmatpush1.msra.mxu0 %v1623
    %1625 = vmatprep.subr.mxu0 0.0
    %v1626 = vand.u32 %v1467, 4294901760
    %1627 = vmatpush1.msra.mxu0 %v1626
    %1628 = vmatprep.subr.mxu0 0.0
    %1629 = vmatpush1.msra.mxu0 0.0
    %1630 = vmatprep.subr.mxu0 0.0
    %1631 = vmatpush1.msra.mxu0 0.0
    %1632 = vmatprep.subr.mxu0 0.0
    %1633 = vmatpush1.msra.mxu0 0.0
    %1634 = vmatprep.subr.mxu0 0.0
    %1635 = vmatpush1.msra.mxu0 0.0
    %1636 = vmatprep.subr.mxu0 0.0
    %1637 = vmatpush1.msra.mxu0 0.0
    %1638 = vmatprep.subr.mxu0 0.0
    %1639 = vmatpush1.msra.mxu0 0.0
    %1640 = vmatprep.subr.mxu0 0.0
    %1641 = vmatpush1.msra.mxu0 0.0
    %1642 = vmatprep.subr.mxu0 0.0
    %1643 = vmatpush1.msra.mxu0 0.0
    %1644 = vmatprep.subr.mxu0 0.0
    %1645 = vmatpush1.msra.mxu0 0.0
    %1646 = vmatprep.subr.mxu0 0.0
    %1647 = vmatpush1.msra.mxu0 0.0
    %1648 = vmatprep.subr.mxu0 0.0
    %1649 = vmatpush1.msra.mxu0 0.0
    %1650 = vmatprep.subr.mxu0 0.0
    %1651 = vmatpush1.msra.mxu0 0.0
    %1652 = vmatprep.subr.mxu0 0.0
    %1653 = vmatpush1.msra.mxu0 0.0
    %1654 = vmatprep.subr.mxu0 0.0
    %1655 = vmatpush1.msra.mxu0 0.0
    %1656 = vmatprep.subr.mxu0 0.0
    %1657 = vmatpush1.msra.mxu0 0.0
    %1658 = vmatprep.subr.mxu0 0.0
    %1659 = vmatpush1.msra.mxu0 0.0
    %1660 = vmatprep.mubr.f32.mxu0 0.0
    %v1661 = vand.u32 %v1564, 4294901760
    %v1662 = vsub.f32 %v1564, %v1661
    %v1663 = vand.u32 %v1662, 4294901760
    %v1664 = vsub.f32 %v1662, %v1663
    %v1665 = vand.u32 %v1664, 4294901760
    %1666 = vmatmul.mubr.f32.gmra.mrb[0].mxu0 %v1665
    %v1667 = vpop.f32.mrb[0].mxu0
    %v1668 = vadd.f32 0.0, %v1667
    %v1669 = vpop.f32.mrb[0].mxu0
    %1670 = vmatprep.mubr.f32.mxu0 0.0
    %v1671 = vand.u32 %v1565, 4294901760
    %v1672 = vsub.f32 %v1565, %v1671
    %v1673 = vand.u32 %v1672, 4294901760
    %v1674 = vsub.f32 %v1672, %v1673
    %v1675 = vand.u32 %v1674, 4294901760
    %1676 = vmatmul.mubr.f32.gmra.mrb[0].mxu0 %v1675
    %v1677 = vpop.f32.mrb[0].mxu0
    %v1678 = vadd.f32 0.0, %v1677
    %v1679 = vpop.f32.mrb[0].mxu0
    %1680 = vmatprep.mubr.f32.mxu0 0.0
    %v1681 = vand.u32 %v1566, 4294901760
    %v1682 = vsub.f32 %v1566, %v1681
    %v1683 = vand.u32 %v1682, 4294901760
    %v1684 = vsub.f32 %v1682, %v1683
    %v1685 = vand.u32 %v1684, 4294901760
    %1686 = vmatmul.mubr.f32.gmra.mrb[0].mxu0 %v1685
    %v1687 = vpop.f32.mrb[0].mxu0
    %v1688 = vadd.f32 0.0, %v1687
    %v1689 = vpop.f32.mrb[0].mxu0
    %1690 = vmatprep.mubr.f32.mxu0 0.0
    %v1691 = vand.u32 %v1567, 4294901760
    %v1692 = vsub.f32 %v1567, %v1691
    %v1693 = vand.u32 %v1692, 4294901760
    %v1694 = vsub.f32 %v1692, %v1693
    %v1695 = vand.u32 %v1694, 4294901760
    %1696 = vmatmul.mubr.f32.gmra.mrb[0].mxu0 %v1695
    %v1697 = vpop.f32.mrb[0].mxu0
    %v1698 = vadd.f32 0.0, %v1697
    %v1699 = vpop.f32.mrb[0].mxu0
    %1700 = vmatprep.mubr.f32.mxu0 0.0
    %v1701 = vand.u32 %v1568, 4294901760
    %v1702 = vsub.f32 %v1568, %v1701
    %v1703 = vand.u32 %v1702, 4294901760
    %v1704 = vsub.f32 %v1702, %v1703
    %v1705 = vand.u32 %v1704, 4294901760
    %1706 = vmatmul.mubr.f32.gmra.mrb[0].mxu0 %v1705
    %v1707 = vpop.f32.mrb[0].mxu0
    %v1708 = vadd.f32 0.0, %v1707
    %v1709 = vpop.f32.mrb[0].mxu0
    %1710 = vmatprep.mubr.f32.mxu0 0.0
    %v1711 = vand.u32 %v1569, 4294901760
    %v1712 = vsub.f32 %v1569, %v1711
    %v1713 = vand.u32 %v1712, 4294901760
    %v1714 = vsub.f32 %v1712, %v1713
    %v1715 = vand.u32 %v1714, 4294901760
    %1716 = vmatmul.mubr.f32.gmra.mrb[0].mxu0 %v1715
    %v1717 = vpop.f32.mrb[0].mxu0
    %v1718 = vadd.f32 0.0, %v1717
    %v1719 = vpop.f32.mrb[0].mxu0
    %1720 = vmatprep.mubr.f32.mxu0 0.0
    %v1721 = vand.u32 %v1570, 4294901760
    %v1722 = vsub.f32 %v1570, %v1721
    %v1723 = vand.u32 %v1722, 4294901760
    %v1724 = vsub.f32 %v1722, %v1723
    %v1725 = vand.u32 %v1724, 4294901760
    %1726 = vmatmul.mubr.f32.gmra.mrb[0].mxu0 %v1725
    %v1727 = vpop.f32.mrb[0].mxu0
    %v1728 = vadd.f32 0.0, %v1727
    %v1729 = vpop.f32.mrb[0].mxu0
    %1730 = vmatprep.mubr.f32.mxu0 0.0
    %v1731 = vand.u32 %v1571, 4294901760
    %v1732 = vsub.f32 %v1571, %v1731
    %v1733 = vand.u32 %v1732, 4294901760
    %v1734 = vsub.f32 %v1732, %v1733
    %v1735 = vand.u32 %v1734, 4294901760
    %1736 = vmatmul.mubr.f32.gmra.mrb[0].mxu0 %v1735
    %v1737 = vpop.f32.mrb[0].mxu0
    %v1738 = vadd.f32 0.0, %v1737
    %v1739 = vpop.f32.mrb[0].mxu0
    %1740 = vmatprep.mubr.f32.mxu0 0.0
    %v1741 = vand.u32 %v1572, 4294901760
    %v1742 = vsub.f32 %v1572, %v1741
    %v1743 = vand.u32 %v1742, 4294901760
    %v1744 = vsub.f32 %v1742, %v1743
    %v1745 = vand.u32 %v1744, 4294901760
    %1746 = vmatmul.mubr.f32.gmra.mrb[0].mxu0 %v1745
    %v1747 = vpop.f32.mrb[0].mxu0
    %v1748 = vadd.f32 0.0, %v1747
    %v1749 = vpop.f32.mrb[0].mxu0
    %1750 = vmatprep.mubr.f32.mxu0 0.0
    %v1751 = vand.u32 %v1573, 4294901760
    %v1752 = vsub.f32 %v1573, %v1751
    %v1753 = vand.u32 %v1752, 4294901760
    %v1754 = vsub.f32 %v1752, %v1753
    %v1755 = vand.u32 %v1754, 4294901760
    %1756 = vmatmul.mubr.f32.gmra.mrb[0].mxu0 %v1755
    %v1757 = vpop.f32.mrb[0].mxu0
    %v1758 = vadd.f32 0.0, %v1757
    %v1759 = vpop.f32.mrb[0].mxu0
    %1760 = vmatprep.mubr.f32.mxu0 0.0
    %v1761 = vand.u32 %v1574, 4294901760
    %v1762 = vsub.f32 %v1574, %v1761
    %v1763 = vand.u32 %v1762, 4294901760
    %v1764 = vsub.f32 %v1762, %v1763
    %v1765 = vand.u32 %v1764, 4294901760
    %1766 = vmatmul.mubr.f32.gmra.mrb[0].mxu0 %v1765
    %v1767 = vpop.f32.mrb[0].mxu0
    %v1768 = vadd.f32 0.0, %v1767
    %v1769 = vpop.f32.mrb[0].mxu0
    %1770 = vmatprep.mubr.f32.mxu0 0.0
    %v1771 = vand.u32 %v1575, 4294901760
    %v1772 = vsub.f32 %v1575, %v1771
    %v1773 = vand.u32 %v1772, 4294901760
    %v1774 = vsub.f32 %v1772, %v1773
    %v1775 = vand.u32 %v1774, 4294901760
    %1776 = vmatmul.mubr.f32.gmra.mrb[0].mxu0 %v1775
    %v1777 = vpop.f32.mrb[0].mxu0
    %v1778 = vadd.f32 0.0, %v1777
    %v1779 = vpop.f32.mrb[0].mxu0
    %1780 = vmatprep.mubr.f32.mxu0 0.0
    %v1781 = vand.u32 %v1576, 4294901760
    %v1782 = vsub.f32 %v1576, %v1781
    %v1783 = vand.u32 %v1782, 4294901760
    %v1784 = vsub.f32 %v1782, %v1783
    %v1785 = vand.u32 %v1784, 4294901760
    %1786 = vmatmul.mubr.f32.gmra.mrb[0].mxu0 %v1785
    %v1787 = vpop.f32.mrb[0].mxu0
    %v1788 = vadd.f32 0.0, %v1787
    %v1789 = vpop.f32.mrb[0].mxu0
    %1790 = vmatprep.mubr.f32.mxu0 0.0
    %v1791 = vand.u32 %v1577, 4294901760
    %v1792 = vsub.f32 %v1577, %v1791
    %v1793 = vand.u32 %v1792, 4294901760
    %v1794 = vsub.f32 %v1792, %v1793
    %v1795 = vand.u32 %v1794, 4294901760
    %1796 = vmatmul.mubr.f32.gmra.mrb[0].mxu0 %v1795
    %v1797 = vpop.f32.mrb[0].mxu0
    %v1798 = vadd.f32 0.0, %v1797
    %v1799 = vpop.f32.mrb[0].mxu0
    %1800 = vmatprep.mubr.f32.mxu0 0.0
    %v1801 = vand.u32 %v1578, 4294901760
    %v1802 = vsub.f32 %v1578, %v1801
    %v1803 = vand.u32 %v1802, 4294901760
    %v1804 = vsub.f32 %v1802, %v1803
    %v1805 = vand.u32 %v1804, 4294901760
    %1806 = vmatmul.mubr.f32.gmra.mrb[0].mxu0 %v1805
    %v1807 = vpop.f32.mrb[0].mxu0
    %v1808 = vadd.f32 0.0, %v1807
    %v1809 = vpop.f32.mrb[0].mxu0
    %1810 = vmatprep.mubr.f32.mxu0 0.0
    %v1811 = vand.u32 %v1579, 4294901760
    %v1812 = vsub.f32 %v1579, %v1811
    %v1813 = vand.u32 %v1812, 4294901760
    %v1814 = vsub.f32 %v1812, %v1813
    %v1815 = vand.u32 %v1814, 4294901760
    %1816 = vmatmul.mubr.f32.gmra.mrb[0].mxu0 %v1815
    %v1817 = vpop.f32.mrb[0].mxu0
    %v1818 = vadd.f32 0.0, %v1817
    %v1819 = vpop.f32.mrb[0].mxu0
    %1820 = vdwg.mxu0
    %1821 = vmatprep.subr.mxu0 0.0
    %v1822 = vand.u32 %v1452, 4294901760
    %v1823 = vsub.f32 %v1452, %v1822
    %v1824 = vand.u32 %v1823, 4294901760
    %v1825 = vsub.f32 %v1823, %v1824
    %v1826 = vand.u32 %v1825, 4294901760
    %1827 = vmatpush1.msra.mxu0 %v1826
    %1828 = vmatprep.subr.mxu0 0.0
    %v1829 = vand.u32 %v1453, 4294901760
    %v1830 = vsub.f32 %v1453, %v1829
    %v1831 = vand.u32 %v1830, 4294901760
    %v1832 = vsub.f32 %v1830, %v1831
    %v1833 = vand.u32 %v1832, 4294901760
    %1834 = vmatpush1.msra.mxu0 %v1833
    %1835 = vmatprep.subr.mxu0 0.0
    %v1836 = vand.u32 %v1454, 4294901760
    %v1837 = vsub.f32 %v1454, %v1836
    %v1838 = vand.u32 %v1837, 4294901760
    %v1839 = vsub.f32 %v1837, %v1838
    %v1840 = vand.u32 %v1839, 4294901760
    %1841 = vmatpush1.msra.mxu0 %v1840
    %1842 = vmatprep.subr.mxu0 0.0
    %v1843 = vand.u32 %v1455, 4294901760
    %v1844 = vsub.f32 %v1455, %v1843
    %v1845 = vand.u32 %v1844, 4294901760
    %v1846 = vsub.f32 %v1844, %v1845
    %v1847 = vand.u32 %v1846, 4294901760
    %1848 = vmatpush1.msra.mxu0 %v1847
    %1849 = vmatprep.subr.mxu0 0.0
    %v1850 = vand.u32 %v1456, 4294901760
    %v1851 = vsub.f32 %v1456, %v1850
    %v1852 = vand.u32 %v1851, 4294901760
    %v1853 = vsub.f32 %v1851, %v1852
    %v1854 = vand.u32 %v1853, 4294901760
    %1855 = vmatpush1.msra.mxu0 %v1854
    %1856 = vmatprep.subr.mxu0 0.0
    %v1857 = vand.u32 %v1457, 4294901760
    %v1858 = vsub.f32 %v1457, %v1857
    %v1859 = vand.u32 %v1858, 4294901760
    %v1860 = vsub.f32 %v1858, %v1859
    %v1861 = vand.u32 %v1860, 4294901760
    %1862 = vmatpush1.msra.mxu0 %v1861
    %1863 = vmatprep.subr.mxu0 0.0
    %v1864 = vand.u32 %v1458, 4294901760
    %v1865 = vsub.f32 %v1458, %v1864
    %v1866 = vand.u32 %v1865, 4294901760
    %v1867 = vsub.f32 %v1865, %v1866
    %v1868 = vand.u32 %v1867, 4294901760
    %1869 = vmatpush1.msra.mxu0 %v1868
    %1870 = vmatprep.subr.mxu0 0.0
    %v1871 = vand.u32 %v1459, 4294901760
    %v1872 = vsub.f32 %v1459, %v1871
    %v1873 = vand.u32 %v1872, 4294901760
    %v1874 = vsub.f32 %v1872, %v1873
    %v1875 = vand.u32 %v1874, 4294901760
    %1876 = vmatpush1.msra.mxu0 %v1875
    %1877 = vmatprep.subr.mxu0 0.0
    %v1878 = vand.u32 %v1460, 4294901760
    %v1879 = vsub.f32 %v1460, %v1878
    %v1880 = vand.u32 %v1879, 4294901760
    %v1881 = vsub.f32 %v1879, %v1880
    %v1882 = vand.u32 %v1881, 4294901760
    %1883 = vmatpush1.msra.mxu0 %v1882
    %1884 = vmatprep.subr.mxu0 0.0
    %v1885 = vand.u32 %v1461, 4294901760
    %v1886 = vsub.f32 %v1461, %v1885
    %v1887 = vand.u32 %v1886, 4294901760
    %v1888 = vsub.f32 %v1886, %v1887
    %v1889 = vand.u32 %v1888, 4294901760
    %1890 = vmatpush1.msra.mxu0 %v1889
    %1891 = vmatprep.subr.mxu0 0.0
    %v1892 = vand.u32 %v1462, 4294901760
    %v1893 = vsub.f32 %v1462, %v1892
    %v1894 = vand.u32 %v1893, 4294901760
    %v1895 = vsub.f32 %v1893, %v1894
    %v1896 = vand.u32 %v1895, 4294901760
    %1897 = vmatpush1.msra.mxu0 %v1896
    %1898 = vmatprep.subr.mxu0 0.0
    %v1899 = vand.u32 %v1463, 4294901760
    %v1900 = vsub.f32 %v1463, %v1899
    %v1901 = vand.u32 %v1900, 4294901760
    %v1902 = vsub.f32 %v1900, %v1901
    %v1903 = vand.u32 %v1902, 4294901760
    %1904 = vmatpush1.msra.mxu0 %v1903
    %1905 = vmatprep.subr.mxu0 0.0
    %v1906 = vand.u32 %v1464, 4294901760
    %v1907 = vsub.f32 %v1464, %v1906
    %v1908 = vand.u32 %v1907, 4294901760
    %v1909 = vsub.f32 %v1907, %v1908
    %v1910 = vand.u32 %v1909, 4294901760
    %1911 = vmatpush1.msra.mxu0 %v1910
    %1912 = vmatprep.subr.mxu0 0.0
    %v1913 = vand.u32 %v1465, 4294901760
    %v1914 = vsub.f32 %v1465, %v1913
    %v1915 = vand.u32 %v1914, 4294901760
    %v1916 = vsub.f32 %v1914, %v1915
    %v1917 = vand.u32 %v1916, 4294901760
    %1918 = vmatpush1.msra.mxu0 %v1917
    %1919 = vmatprep.subr.mxu0 0.0
    %v1920 = vand.u32 %v1466, 4294901760
    %v1921 = vsub.f32 %v1466, %v1920
    %v1922 = vand.u32 %v1921, 4294901760
    %v1923 = vsub.f32 %v1921, %v1922
    %v1924 = vand.u32 %v1923, 4294901760
    %1925 = vmatpush1.msra.mxu0 %v1924
    %1926 = vmatprep.subr.mxu0 0.0
    %v1927 = vand.u32 %v1467, 4294901760
    %v1928 = vsub.f32 %v1467, %v1927
    %v1929 = vand.u32 %v1928, 4294901760
    %v1930 = vsub.f32 %v1928, %v1929
    %v1931 = vand.u32 %v1930, 4294901760
    %1932 = vmatpush1.msra.mxu0 %v1931
    %1933 = vmatprep.subr.mxu0 0.0
    %1934 = vmatpush1.msra.mxu0 0.0
    %1935 = vmatprep.subr.mxu0 0.0
    %1936 = vmatpush1.msra.mxu0 0.0
    %1937 = vmatprep.subr.mxu0 0.0
    %1938 = vmatpush1.msra.mxu0 0.0
    %1939 = vmatprep.subr.mxu0 0.0
    %1940 = vmatpush1.msra.mxu0 0.0
    %1941 = vmatprep.subr.mxu0 0.0
    %1942 = vmatpush1.msra.mxu0 0.0
    %1943 = vmatprep.subr.mxu0 0.0
    %1944 = vmatpush1.msra.mxu0 0.0
    %1945 = vmatprep.subr.mxu0 0.0
    %1946 = vmatpush1.msra.mxu0 0.0
    %1947 = vmatprep.subr.mxu0 0.0
    %1948 = vmatpush1.msra.mxu0 0.0
    %1949 = vmatprep.subr.mxu0 0.0
    %1950 = vmatpush1.msra.mxu0 0.0
    %1951 = vmatprep.subr.mxu0 0.0
    %1952 = vmatpush1.msra.mxu0 0.0
    %1953 = vmatprep.subr.mxu0 0.0
    %1954 = vmatpush1.msra.mxu0 0.0
    %1955 = vmatprep.subr.mxu0 0.0
    %1956 = vmatpush1.msra.mxu0 0.0
    %1957 = vmatprep.subr.mxu0 0.0
    %1958 = vmatpush1.msra.mxu0 0.0
    %1959 = vmatprep.subr.mxu0 0.0
    %1960 = vmatpush1.msra.mxu0 0.0
    %1961 = vmatprep.subr.mxu0 0.0
    %1962 = vmatpush1.msra.mxu0 0.0
    %1963 = vmatprep.subr.mxu0 0.0
    %1964 = vmatpush1.msra.mxu0 0.0
    %1965 = vmatprep.mubr.f32.mxu0 0.0
    %v1966 = vand.u32 %v1564, 4294901760
    %1967 = vmatmul.mubr.f32.gmra.mrb[0].mxu0 %v1966
    %v1968 = vpop.f32.mrb[0].mxu0
    %v1969 = vadd.f32 %v1668, %v1968
    %v1970 = vpop.f32.mrb[0].mxu0
    %1971 = vmatprep.mubr.f32.mxu0 0.0
    %v1972 = vand.u32 %v1565, 4294901760
    %1973 = vmatmul.mubr.f32.gmra.mrb[0].mxu0 %v1972
    %v1974 = vpop.f32.mrb[0].mxu0
    %v1975 = vadd.f32 %v1678, %v1974
    %v1976 = vpop.f32.mrb[0].mxu0
    %1977 = vmatprep.mubr.f32.mxu0 0.0
    %v1978 = vand.u32 %v1566, 4294901760
    %1979 = vmatmul.mubr.f32.gmra.mrb[0].mxu0 %v1978
    %v1980 = vpop.f32.mrb[0].mxu0
    %v1981 = vadd.f32 %v1688, %v1980
    %v1982 = vpop.f32.mrb[0].mxu0
    %1983 = vmatprep.mubr.f32.mxu0 0.0
    %v1984 = vand.u32 %v1567, 4294901760
    %1985 = vmatmul.mubr.f32.gmra.mrb[0].mxu0 %v1984
    %v1986 = vpop.f32.mrb[0].mxu0
    %v1987 = vadd.f32 %v1698, %v1986
    %v1988 = vpop.f32.mrb[0].mxu0
    %1989 = vmatprep.mubr.f32.mxu0 0.0
    %v1990 = vand.u32 %v1568, 4294901760
    %1991 = vmatmul.mubr.f32.gmra.mrb[0].mxu0 %v1990
    %v1992 = vpop.f32.mrb[0].mxu0
    %v1993 = vadd.f32 %v1708, %v1992
    %v1994 = vpop.f32.mrb[0].mxu0
    %1995 = vmatprep.mubr.f32.mxu0 0.0
    %v1996 = vand.u32 %v1569, 4294901760
    %1997 = vmatmul.mubr.f32.gmra.mrb[0].mxu0 %v1996
    %v1998 = vpop.f32.mrb[0].mxu0
    %v1999 = vadd.f32 %v1718, %v1998
    %v2000 = vpop.f32.mrb[0].mxu0
    %2001 = vmatprep.mubr.f32.mxu0 0.0
    %v2002 = vand.u32 %v1570, 4294901760
    %2003 = vmatmul.mubr.f32.gmra.mrb[0].mxu0 %v2002
    %v2004 = vpop.f32.mrb[0].mxu0
    %v2005 = vadd.f32 %v1728, %v2004
    %v2006 = vpop.f32.mrb[0].mxu0
    %2007 = vmatprep.mubr.f32.mxu0 0.0
    %v2008 = vand.u32 %v1571, 4294901760
    %2009 = vmatmul.mubr.f32.gmra.mrb[0].mxu0 %v2008
    %v2010 = vpop.f32.mrb[0].mxu0
    %v2011 = vadd.f32 %v1738, %v2010
    %v2012 = vpop.f32.mrb[0].mxu0
    %2013 = vmatprep.mubr.f32.mxu0 0.0
    %v2014 = vand.u32 %v1572, 4294901760
    %2015 = vmatmul.mubr.f32.gmra.mrb[0].mxu0 %v2014
    %v2016 = vpop.f32.mrb[0].mxu0
    %v2017 = vadd.f32 %v1748, %v2016
    %v2018 = vpop.f32.mrb[0].mxu0
    %2019 = vmatprep.mubr.f32.mxu0 0.0
    %v2020 = vand.u32 %v1573, 4294901760
    %2021 = vmatmul.mubr.f32.gmra.mrb[0].mxu0 %v2020
    %v2022 = vpop.f32.mrb[0].mxu0
    %v2023 = vadd.f32 %v1758, %v2022
    %v2024 = vpop.f32.mrb[0].mxu0
    %2025 = vmatprep.mubr.f32.mxu0 0.0
    %v2026 = vand.u32 %v1574, 4294901760
    %2027 = vmatmul.mubr.f32.gmra.mrb[0].mxu0 %v2026
    %v2028 = vpop.f32.mrb[0].mxu0
    %v2029 = vadd.f32 %v1768, %v2028
    %v2030 = vpop.f32.mrb[0].mxu0
    %2031 = vmatprep.mubr.f32.mxu0 0.0
    %v2032 = vand.u32 %v1575, 4294901760
    %2033 = vmatmul.mubr.f32.gmra.mrb[0].mxu0 %v2032
    %v2034 = vpop.f32.mrb[0].mxu0
    %v2035 = vadd.f32 %v1778, %v2034
    %v2036 = vpop.f32.mrb[0].mxu0
    %2037 = vmatprep.mubr.f32.mxu0 0.0
    %v2038 = vand.u32 %v1576, 4294901760
    %2039 = vmatmul.mubr.f32.gmra.mrb[0].mxu0 %v2038
    %v2040 = vpop.f32.mrb[0].mxu0
    %v2041 = vadd.f32 %v1788, %v2040
    %v2042 = vpop.f32.mrb[0].mxu0
    %2043 = vmatprep.mubr.f32.mxu0 0.0
    %v2044 = vand.u32 %v1577, 4294901760
    %2045 = vmatmul.mubr.f32.gmra.mrb[0].mxu0 %v2044
    %v2046 = vpop.f32.mrb[0].mxu0
    %v2047 = vadd.f32 %v1798, %v2046
    %v2048 = vpop.f32.mrb[0].mxu0
    %2049 = vmatprep.mubr.f32.mxu0 0.0
    %v2050 = vand.u32 %v1578, 4294901760
    %2051 = vmatmul.mubr.f32.gmra.mrb[0].mxu0 %v2050
    %v2052 = vpop.f32.mrb[0].mxu0
    %v2053 = vadd.f32 %v1808, %v2052
    %v2054 = vpop.f32.mrb[0].mxu0
    %2055 = vmatprep.mubr.f32.mxu0 0.0
    %v2056 = vand.u32 %v1579, 4294901760
    %2057 = vmatmul.mubr.f32.gmra.mrb[0].mxu0 %v2056
    %v2058 = vpop.f32.mrb[0].mxu0
    %v2059 = vadd.f32 %v1818, %v2058
    %v2060 = vpop.f32.mrb[0].mxu0
    %2061 = vdwg.mxu0
    %2062 = vmatprep.subr.mxu0 0.0
    %v2063 = vand.u32 %v1452, 4294901760
    %v2064 = vsub.f32 %v1452, %v2063
    %2065 = vmatpush1.msra.mxu0 %v2064
    %2066 = vmatprep.subr.mxu0 0.0
    %v2067 = vand.u32 %v1453, 4294901760
    %v2068 = vsub.f32 %v1453, %v2067
    %2069 = vmatpush1.msra.mxu0 %v2068
    %2070 = vmatprep.subr.mxu0 0.0
    %v2071 = vand.u32 %v1454, 4294901760
    %v2072 = vsub.f32 %v1454, %v2071
    %2073 = vmatpush1.msra.mxu0 %v2072
    %2074 = vmatprep.subr.mxu0 0.0
    %v2075 = vand.u32 %v1455, 4294901760
    %v2076 = vsub.f32 %v1455, %v2075
    %2077 = vmatpush1.msra.mxu0 %v2076
    %2078 = vmatprep.subr.mxu0 0.0
    %v2079 = vand.u32 %v1456, 4294901760
    %v2080 = vsub.f32 %v1456, %v2079
    %2081 = vmatpush1.msra.mxu0 %v2080
    %2082 = vmatprep.subr.mxu0 0.0
    %v2083 = vand.u32 %v1457, 4294901760
    %v2084 = vsub.f32 %v1457, %v2083
    %2085 = vmatpush1.msra.mxu0 %v2084
    %2086 = vmatprep.subr.mxu0 0.0
    %v2087 = vand.u32 %v1458, 4294901760
    %v2088 = vsub.f32 %v1458, %v2087
    %2089 = vmatpush1.msra.mxu0 %v2088
    %2090 = vmatprep.subr.mxu0 0.0
    %v2091 = vand.u32 %v1459, 4294901760
    %v2092 = vsub.f32 %v1459, %v2091
    %2093 = vmatpush1.msra.mxu0 %v2092
    %2094 = vmatprep.subr.mxu0 0.0
    %v2095 = vand.u32 %v1460, 4294901760
    %v2096 = vsub.f32 %v1460, %v2095
    %2097 = vmatpush1.msra.mxu0 %v2096
    %2098 = vmatprep.subr.mxu0 0.0
    %v2099 = vand.u32 %v1461, 4294901760
    %v2100 = vsub.f32 %v1461, %v2099
    %2101 = vmatpush1.msra.mxu0 %v2100
    %2102 = vmatprep.subr.mxu0 0.0
    %v2103 = vand.u32 %v1462, 4294901760
    %v2104 = vsub.f32 %v1462, %v2103
    %2105 = vmatpush1.msra.mxu0 %v2104
    %2106 = vmatprep.subr.mxu0 0.0
    %v2107 = vand.u32 %v1463, 4294901760
    %v2108 = vsub.f32 %v1463, %v2107
    %2109 = vmatpush1.msra.mxu0 %v2108
    %2110 = vmatprep.subr.mxu0 0.0
    %v2111 = vand.u32 %v1464, 4294901760
    %v2112 = vsub.f32 %v1464, %v2111
    %2113 = vmatpush1.msra.mxu0 %v2112
    %2114 = vmatprep.subr.mxu0 0.0
    %v2115 = vand.u32 %v1465, 4294901760
    %v2116 = vsub.f32 %v1465, %v2115
    %2117 = vmatpush1.msra.mxu0 %v2116
    %2118 = vmatprep.subr.mxu0 0.0
    %v2119 = vand.u32 %v1466, 4294901760
    %v2120 = vsub.f32 %v1466, %v2119
    %2121 = vmatpush1.msra.mxu0 %v2120
    %2122 = vmatprep.subr.mxu0 0.0
    %v2123 = vand.u32 %v1467, 4294901760
    %v2124 = vsub.f32 %v1467, %v2123
    %2125 = vmatpush1.msra.mxu0 %v2124
    %2126 = vmatprep.subr.mxu0 0.0
    %2127 = vmatpush1.msra.mxu0 0.0
    %2128 = vmatprep.subr.mxu0 0.0
    %2129 = vmatpush1.msra.mxu0 0.0
    %2130 = vmatprep.subr.mxu0 0.0
    %2131 = vmatpush1.msra.mxu0 0.0
    %2132 = vmatprep.subr.mxu0 0.0
    %2133 = vmatpush1.msra.mxu0 0.0
    %2134 = vmatprep.subr.mxu0 0.0
    %2135 = vmatpush1.msra.mxu0 0.0
    %2136 = vmatprep.subr.mxu0 0.0
    %2137 = vmatpush1.msra.mxu0 0.0
    %2138 = vmatprep.subr.mxu0 0.0
    %2139 = vmatpush1.msra.mxu0 0.0
    %2140 = vmatprep.subr.mxu0 0.0
    %2141 = vmatpush1.msra.mxu0 0.0
    %2142 = vmatprep.subr.mxu0 0.0
    %2143 = vmatpush1.msra.mxu0 0.0
    %2144 = vmatprep.subr.mxu0 0.0
    %2145 = vmatpush1.msra.mxu0 0.0
    %2146 = vmatprep.subr.mxu0 0.0
    %2147 = vmatpush1.msra.mxu0 0.0
    %2148 = vmatprep.subr.mxu0 0.0
    %2149 = vmatpush1.msra.mxu0 0.0
    %2150 = vmatprep.subr.mxu0 0.0
    %2151 = vmatpush1.msra.mxu0 0.0
    %2152 = vmatprep.subr.mxu0 0.0
    %2153 = vmatpush1.msra.mxu0 0.0
    %2154 = vmatprep.subr.mxu0 0.0
    %2155 = vmatpush1.msra.mxu0 0.0
    %2156 = vmatprep.subr.mxu0 0.0
    %2157 = vmatpush1.msra.mxu0 0.0
    %2158 = vmatprep.mubr.f32.mxu0 0.0
    %v2159 = vand.u32 %v1564, 4294901760
    %v2160 = vsub.f32 %v1564, %v2159
    %2161 = vmatmul.mubr.f32.gmra.mrb[0].mxu0 %v2160
    %v2162 = vpop.f32.mrb[0].mxu0
    %v2163 = vadd.f32 %v1969, %v2162
    %v2164 = vpop.f32.mrb[0].mxu0
    %2165 = vmatprep.mubr.f32.mxu0 0.0
    %v2166 = vand.u32 %v1565, 4294901760
    %v2167 = vsub.f32 %v1565, %v2166
    %2168 = vmatmul.mubr.f32.gmra.mrb[0].mxu0 %v2167
    %v2169 = vpop.f32.mrb[0].mxu0
    %v2170 = vadd.f32 %v1975, %v2169
    %v2171 = vpop.f32.mrb[0].mxu0
    %2172 = vmatprep.mubr.f32.mxu0 0.0
    %v2173 = vand.u32 %v1566, 4294901760
    %v2174 = vsub.f32 %v1566, %v2173
    %2175 = vmatmul.mubr.f32.gmra.mrb[0].mxu0 %v2174
    %v2176 = vpop.f32.mrb[0].mxu0
    %v2177 = vadd.f32 %v1981, %v2176
    %v2178 = vpop.f32.mrb[0].mxu0
    %2179 = vmatprep.mubr.f32.mxu0 0.0
    %v2180 = vand.u32 %v1567, 4294901760
    %v2181 = vsub.f32 %v1567, %v2180
    %2182 = vmatmul.mubr.f32.gmra.mrb[0].mxu0 %v2181
    %v2183 = vpop.f32.mrb[0].mxu0
    %v2184 = vadd.f32 %v1987, %v2183
    %v2185 = vpop.f32.mrb[0].mxu0
    %2186 = vmatprep.mubr.f32.mxu0 0.0
    %v2187 = vand.u32 %v1568, 4294901760
    %v2188 = vsub.f32 %v1568, %v2187
    %2189 = vmatmul.mubr.f32.gmra.mrb[0].mxu0 %v2188
    %v2190 = vpop.f32.mrb[0].mxu0
    %v2191 = vadd.f32 %v1993, %v2190
    %v2192 = vpop.f32.mrb[0].mxu0
    %2193 = vmatprep.mubr.f32.mxu0 0.0
    %v2194 = vand.u32 %v1569, 4294901760
    %v2195 = vsub.f32 %v1569, %v2194
    %2196 = vmatmul.mubr.f32.gmra.mrb[0].mxu0 %v2195
    %v2197 = vpop.f32.mrb[0].mxu0
    %v2198 = vadd.f32 %v1999, %v2197
    %v2199 = vpop.f32.mrb[0].mxu0
    %2200 = vmatprep.mubr.f32.mxu0 0.0
    %v2201 = vand.u32 %v1570, 4294901760
    %v2202 = vsub.f32 %v1570, %v2201
    %2203 = vmatmul.mubr.f32.gmra.mrb[0].mxu0 %v2202
    %v2204 = vpop.f32.mrb[0].mxu0
    %v2205 = vadd.f32 %v2005, %v2204
    %v2206 = vpop.f32.mrb[0].mxu0
    %2207 = vmatprep.mubr.f32.mxu0 0.0
    %v2208 = vand.u32 %v1571, 4294901760
    %v2209 = vsub.f32 %v1571, %v2208
    %2210 = vmatmul.mubr.f32.gmra.mrb[0].mxu0 %v2209
    %v2211 = vpop.f32.mrb[0].mxu0
    %v2212 = vadd.f32 %v2011, %v2211
    %v2213 = vpop.f32.mrb[0].mxu0
    %2214 = vmatprep.mubr.f32.mxu0 0.0
    %v2215 = vand.u32 %v1572, 4294901760
    %v2216 = vsub.f32 %v1572, %v2215
    %2217 = vmatmul.mubr.f32.gmra.mrb[0].mxu0 %v2216
    %v2218 = vpop.f32.mrb[0].mxu0
    %v2219 = vadd.f32 %v2017, %v2218
    %v2220 = vpop.f32.mrb[0].mxu0
    %2221 = vmatprep.mubr.f32.mxu0 0.0
    %v2222 = vand.u32 %v1573, 4294901760
    %v2223 = vsub.f32 %v1573, %v2222
    %2224 = vmatmul.mubr.f32.gmra.mrb[0].mxu0 %v2223
    %v2225 = vpop.f32.mrb[0].mxu0
    %v2226 = vadd.f32 %v2023, %v2225
    %v2227 = vpop.f32.mrb[0].mxu0
    %2228 = vmatprep.mubr.f32.mxu0 0.0
    %v2229 = vand.u32 %v1574, 4294901760
    %v2230 = vsub.f32 %v1574, %v2229
    %2231 = vmatmul.mubr.f32.gmra.mrb[0].mxu0 %v2230
    %v2232 = vpop.f32.mrb[0].mxu0
    %v2233 = vadd.f32 %v2029, %v2232
    %v2234 = vpop.f32.mrb[0].mxu0
    %2235 = vmatprep.mubr.f32.mxu0 0.0
    %v2236 = vand.u32 %v1575, 4294901760
    %v2237 = vsub.f32 %v1575, %v2236
    %2238 = vmatmul.mubr.f32.gmra.mrb[0].mxu0 %v2237
    %v2239 = vpop.f32.mrb[0].mxu0
    %v2240 = vadd.f32 %v2035, %v2239
    %v2241 = vpop.f32.mrb[0].mxu0
    %2242 = vmatprep.mubr.f32.mxu0 0.0
    %v2243 = vand.u32 %v1576, 4294901760
    %v2244 = vsub.f32 %v1576, %v2243
    %2245 = vmatmul.mubr.f32.gmra.mrb[0].mxu0 %v2244
    %v2246 = vpop.f32.mrb[0].mxu0
    %v2247 = vadd.f32 %v2041, %v2246
    %v2248 = vpop.f32.mrb[0].mxu0
    %2249 = vmatprep.mubr.f32.mxu0 0.0
    %v2250 = vand.u32 %v1577, 4294901760
    %v2251 = vsub.f32 %v1577, %v2250
    %2252 = vmatmul.mubr.f32.gmra.mrb[0].mxu0 %v2251
    %v2253 = vpop.f32.mrb[0].mxu0
    %v2254 = vadd.f32 %v2047, %v2253
    %v2255 = vpop.f32.mrb[0].mxu0
    %2256 = vmatprep.mubr.f32.mxu0 0.0
    %v2257 = vand.u32 %v1578, 4294901760
    %v2258 = vsub.f32 %v1578, %v2257
    %2259 = vmatmul.mubr.f32.gmra.mrb[0].mxu0 %v2258
    %v2260 = vpop.f32.mrb[0].mxu0
    %v2261 = vadd.f32 %v2053, %v2260
    %v2262 = vpop.f32.mrb[0].mxu0
    %2263 = vmatprep.mubr.f32.mxu0 0.0
    %v2264 = vand.u32 %v1579, 4294901760
    %v2265 = vsub.f32 %v1579, %v2264
    %2266 = vmatmul.mubr.f32.gmra.mrb[0].mxu0 %v2265
    %v2267 = vpop.f32.mrb[0].mxu0
    %v2268 = vadd.f32 %v2059, %v2267
    %v2269 = vpop.f32.mrb[0].mxu0
    %2270 = vdwg.mxu0
    %2271 = vmatprep.subr.mxu0 0.0
    %v2272 = vand.u32 %v1452, 4294901760
    %2273 = vmatpush1.msra.mxu0 %v2272
    %2274 = vmatprep.subr.mxu0 0.0
    %v2275 = vand.u32 %v1453, 4294901760
    %2276 = vmatpush1.msra.mxu0 %v2275
    %2277 = vmatprep.subr.mxu0 0.0
    %v2278 = vand.u32 %v1454, 4294901760
    %2279 = vmatpush1.msra.mxu0 %v2278
    %2280 = vmatprep.subr.mxu0 0.0
    %v2281 = vand.u32 %v1455, 4294901760
    %2282 = vmatpush1.msra.mxu0 %v2281
    %2283 = vmatprep.subr.mxu0 0.0
    %v2284 = vand.u32 %v1456, 4294901760
    %2285 = vmatpush1.msra.mxu0 %v2284
    %2286 = vmatprep.subr.mxu0 0.0
    %v2287 = vand.u32 %v1457, 4294901760
    %2288 = vmatpush1.msra.mxu0 %v2287
    %2289 = vmatprep.subr.mxu0 0.0
    %v2290 = vand.u32 %v1458, 4294901760
    %2291 = vmatpush1.msra.mxu0 %v2290
    %2292 = vmatprep.subr.mxu0 0.0
    %v2293 = vand.u32 %v1459, 4294901760
    %2294 = vmatpush1.msra.mxu0 %v2293
    %2295 = vmatprep.subr.mxu0 0.0
    %v2296 = vand.u32 %v1460, 4294901760
    %2297 = vmatpush1.msra.mxu0 %v2296
    %2298 = vmatprep.subr.mxu0 0.0
    %v2299 = vand.u32 %v1461, 4294901760
    %2300 = vmatpush1.msra.mxu0 %v2299
    %2301 = vmatprep.subr.mxu0 0.0
    %v2302 = vand.u32 %v1462, 4294901760
    %2303 = vmatpush1.msra.mxu0 %v2302
    %2304 = vmatprep.subr.mxu0 0.0
    %v2305 = vand.u32 %v1463, 4294901760
    %2306 = vmatpush1.msra.mxu0 %v2305
    %2307 = vmatprep.subr.mxu0 0.0
    %v2308 = vand.u32 %v1464, 4294901760
    %2309 = vmatpush1.msra.mxu0 %v2308
    %2310 = vmatprep.subr.mxu0 0.0
    %v2311 = vand.u32 %v1465, 4294901760
    %2312 = vmatpush1.msra.mxu0 %v2311
    %2313 = vmatprep.subr.mxu0 0.0
    %v2314 = vand.u32 %v1466, 4294901760
    %2315 = vmatpush1.msra.mxu0 %v2314
    %2316 = vmatprep.subr.mxu0 0.0
    %v2317 = vand.u32 %v1467, 4294901760
    %2318 = vmatpush1.msra.mxu0 %v2317
    %2319 = vmatprep.subr.mxu0 0.0
    %2320 = vmatpush1.msra.mxu0 0.0
    %2321 = vmatprep.subr.mxu0 0.0
    %2322 = vmatpush1.msra.mxu0 0.0
    %2323 = vmatprep.subr.mxu0 0.0
    %2324 = vmatpush1.msra.mxu0 0.0
    %2325 = vmatprep.subr.mxu0 0.0
    %2326 = vmatpush1.msra.mxu0 0.0
    %2327 = vmatprep.subr.mxu0 0.0
    %2328 = vmatpush1.msra.mxu0 0.0
    %2329 = vmatprep.subr.mxu0 0.0
    %2330 = vmatpush1.msra.mxu0 0.0
    %2331 = vmatprep.subr.mxu0 0.0
    %2332 = vmatpush1.msra.mxu0 0.0
    %2333 = vmatprep.subr.mxu0 0.0
    %2334 = vmatpush1.msra.mxu0 0.0
    %2335 = vmatprep.subr.mxu0 0.0
    %2336 = vmatpush1.msra.mxu0 0.0
    %2337 = vmatprep.subr.mxu0 0.0
    %2338 = vmatpush1.msra.mxu0 0.0
    %2339 = vmatprep.subr.mxu0 0.0
    %2340 = vmatpush1.msra.mxu0 0.0
    %2341 = vmatprep.subr.mxu0 0.0
    %2342 = vmatpush1.msra.mxu0 0.0
    %2343 = vmatprep.subr.mxu0 0.0
    %2344 = vmatpush1.msra.mxu0 0.0
    %2345 = vmatprep.subr.mxu0 0.0
    %2346 = vmatpush1.msra.mxu0 0.0
    %2347 = vmatprep.subr.mxu0 0.0
    %2348 = vmatpush1.msra.mxu0 0.0
    %2349 = vmatprep.subr.mxu0 0.0
    %2350 = vmatpush1.msra.mxu0 0.0
    %2351 = vmatprep.mubr.f32.mxu0 0.0
    %v2352 = vand.u32 %v1564, 4294901760
    %v2353 = vsub.f32 %v1564, %v2352
    %v2354 = vand.u32 %v2353, 4294901760
    %2355 = vmatmul.mubr.f32.gmra.mrb[0].mxu0 %v2354
    %v2356 = vpop.f32.mrb[0].mxu0
    %v2357 = vadd.f32 %v2163, %v2356
    %v2358 = vpop.f32.mrb[0].mxu0
    %2359 = vmatprep.mubr.f32.mxu0 0.0
    %v2360 = vand.u32 %v1565, 4294901760
    %v2361 = vsub.f32 %v1565, %v2360
    %v2362 = vand.u32 %v2361, 4294901760
    %2363 = vmatmul.mubr.f32.gmra.mrb[0].mxu0 %v2362
    %v2364 = vpop.f32.mrb[0].mxu0
    %v2365 = vadd.f32 %v2170, %v2364
    %v2366 = vpop.f32.mrb[0].mxu0
    %2367 = vmatprep.mubr.f32.mxu0 0.0
    %v2368 = vand.u32 %v1566, 4294901760
    %v2369 = vsub.f32 %v1566, %v2368
    %v2370 = vand.u32 %v2369, 4294901760
    %2371 = vmatmul.mubr.f32.gmra.mrb[0].mxu0 %v2370
    %v2372 = vpop.f32.mrb[0].mxu0
    %v2373 = vadd.f32 %v2177, %v2372
    %v2374 = vpop.f32.mrb[0].mxu0
    %2375 = vmatprep.mubr.f32.mxu0 0.0
    %v2376 = vand.u32 %v1567, 4294901760
    %v2377 = vsub.f32 %v1567, %v2376
    %v2378 = vand.u32 %v2377, 4294901760
    %2379 = vmatmul.mubr.f32.gmra.mrb[0].mxu0 %v2378
    %v2380 = vpop.f32.mrb[0].mxu0
    %v2381 = vadd.f32 %v2184, %v2380
    %v2382 = vpop.f32.mrb[0].mxu0
    %2383 = vmatprep.mubr.f32.mxu0 0.0
    %v2384 = vand.u32 %v1568, 4294901760
    %v2385 = vsub.f32 %v1568, %v2384
    %v2386 = vand.u32 %v2385, 4294901760
    %2387 = vmatmul.mubr.f32.gmra.mrb[0].mxu0 %v2386
    %v2388 = vpop.f32.mrb[0].mxu0
    %v2389 = vadd.f32 %v2191, %v2388
    %v2390 = vpop.f32.mrb[0].mxu0
    %2391 = vmatprep.mubr.f32.mxu0 0.0
    %v2392 = vand.u32 %v1569, 4294901760
    %v2393 = vsub.f32 %v1569, %v2392
    %v2394 = vand.u32 %v2393, 4294901760
    %2395 = vmatmul.mubr.f32.gmra.mrb[0].mxu0 %v2394
    %v2396 = vpop.f32.mrb[0].mxu0
    %v2397 = vadd.f32 %v2198, %v2396
    %v2398 = vpop.f32.mrb[0].mxu0
    %2399 = vmatprep.mubr.f32.mxu0 0.0
    %v2400 = vand.u32 %v1570, 4294901760
    %v2401 = vsub.f32 %v1570, %v2400
    %v2402 = vand.u32 %v2401, 4294901760
    %2403 = vmatmul.mubr.f32.gmra.mrb[0].mxu0 %v2402
    %v2404 = vpop.f32.mrb[0].mxu0
    %v2405 = vadd.f32 %v2205, %v2404
    %v2406 = vpop.f32.mrb[0].mxu0
    %2407 = vmatprep.mubr.f32.mxu0 0.0
    %v2408 = vand.u32 %v1571, 4294901760
    %v2409 = vsub.f32 %v1571, %v2408
    %v2410 = vand.u32 %v2409, 4294901760
    %2411 = vmatmul.mubr.f32.gmra.mrb[0].mxu0 %v2410
    %v2412 = vpop.f32.mrb[0].mxu0
    %v2413 = vadd.f32 %v2212, %v2412
    %v2414 = vpop.f32.mrb[0].mxu0
    %2415 = vmatprep.mubr.f32.mxu0 0.0
    %v2416 = vand.u32 %v1572, 4294901760
    %v2417 = vsub.f32 %v1572, %v2416
    %v2418 = vand.u32 %v2417, 4294901760
    %2419 = vmatmul.mubr.f32.gmra.mrb[0].mxu0 %v2418
    %v2420 = vpop.f32.mrb[0].mxu0
    %v2421 = vadd.f32 %v2219, %v2420
    %v2422 = vpop.f32.mrb[0].mxu0
    %2423 = vmatprep.mubr.f32.mxu0 0.0
    %v2424 = vand.u32 %v1573, 4294901760
    %v2425 = vsub.f32 %v1573, %v2424
    %v2426 = vand.u32 %v2425, 4294901760
    %2427 = vmatmul.mubr.f32.gmra.mrb[0].mxu0 %v2426
    %v2428 = vpop.f32.mrb[0].mxu0
    %v2429 = vadd.f32 %v2226, %v2428
    %v2430 = vpop.f32.mrb[0].mxu0
    %2431 = vmatprep.mubr.f32.mxu0 0.0
    %v2432 = vand.u32 %v1574, 4294901760
    %v2433 = vsub.f32 %v1574, %v2432
    %v2434 = vand.u32 %v2433, 4294901760
    %2435 = vmatmul.mubr.f32.gmra.mrb[0].mxu0 %v2434
    %v2436 = vpop.f32.mrb[0].mxu0
    %v2437 = vadd.f32 %v2233, %v2436
    %v2438 = vpop.f32.mrb[0].mxu0
    %2439 = vmatprep.mubr.f32.mxu0 0.0
    %v2440 = vand.u32 %v1575, 4294901760
    %v2441 = vsub.f32 %v1575, %v2440
    %v2442 = vand.u32 %v2441, 4294901760
    %2443 = vmatmul.mubr.f32.gmra.mrb[0].mxu0 %v2442
    %v2444 = vpop.f32.mrb[0].mxu0
    %v2445 = vadd.f32 %v2240, %v2444
    %v2446 = vpop.f32.mrb[0].mxu0
    %2447 = vmatprep.mubr.f32.mxu0 0.0
    %v2448 = vand.u32 %v1576, 4294901760
    %v2449 = vsub.f32 %v1576, %v2448
    %v2450 = vand.u32 %v2449, 4294901760
    %2451 = vmatmul.mubr.f32.gmra.mrb[0].mxu0 %v2450
    %v2452 = vpop.f32.mrb[0].mxu0
    %v2453 = vadd.f32 %v2247, %v2452
    %v2454 = vpop.f32.mrb[0].mxu0
    %2455 = vmatprep.mubr.f32.mxu0 0.0
    %v2456 = vand.u32 %v1577, 4294901760
    %v2457 = vsub.f32 %v1577, %v2456
    %v2458 = vand.u32 %v2457, 4294901760
    %2459 = vmatmul.mubr.f32.gmra.mrb[0].mxu0 %v2458
    %v2460 = vpop.f32.mrb[0].mxu0
    %v2461 = vadd.f32 %v2254, %v2460
    %v2462 = vpop.f32.mrb[0].mxu0
    %2463 = vmatprep.mubr.f32.mxu0 0.0
    %v2464 = vand.u32 %v1578, 4294901760
    %v2465 = vsub.f32 %v1578, %v2464
    %v2466 = vand.u32 %v2465, 4294901760
    %2467 = vmatmul.mubr.f32.gmra.mrb[0].mxu0 %v2466
    %v2468 = vpop.f32.mrb[0].mxu0
    %v2469 = vadd.f32 %v2261, %v2468
    %v2470 = vpop.f32.mrb[0].mxu0
    %2471 = vmatprep.mubr.f32.mxu0 0.0
    %v2472 = vand.u32 %v1579, 4294901760
    %v2473 = vsub.f32 %v1579, %v2472
    %v2474 = vand.u32 %v2473, 4294901760
    %2475 = vmatmul.mubr.f32.gmra.mrb[0].mxu0 %v2474
    %v2476 = vpop.f32.mrb[0].mxu0
    %v2477 = vadd.f32 %v2268, %v2476
    %v2478 = vpop.f32.mrb[0].mxu0
    %2479 = vdwg.mxu0
    %2480 = vmatprep.subr.mxu0 0.0
    %v2481 = vand.u32 %v1452, 4294901760
    %v2482 = vsub.f32 %v1452, %v2481
    %v2483 = vand.u32 %v2482, 4294901760
    %2484 = vmatpush1.msra.mxu0 %v2483
    %2485 = vmatprep.subr.mxu0 0.0
    %v2486 = vand.u32 %v1453, 4294901760
    %v2487 = vsub.f32 %v1453, %v2486
    %v2488 = vand.u32 %v2487, 4294901760
    %2489 = vmatpush1.msra.mxu0 %v2488
    %2490 = vmatprep.subr.mxu0 0.0
    %v2491 = vand.u32 %v1454, 4294901760
    %v2492 = vsub.f32 %v1454, %v2491
    %v2493 = vand.u32 %v2492, 4294901760
    %2494 = vmatpush1.msra.mxu0 %v2493
    %2495 = vmatprep.subr.mxu0 0.0
    %v2496 = vand.u32 %v1455, 4294901760
    %v2497 = vsub.f32 %v1455, %v2496
    %v2498 = vand.u32 %v2497, 4294901760
    %2499 = vmatpush1.msra.mxu0 %v2498
    %2500 = vmatprep.subr.mxu0 0.0
    %v2501 = vand.u32 %v1456, 4294901760
    %v2502 = vsub.f32 %v1456, %v2501
    %v2503 = vand.u32 %v2502, 4294901760
    %2504 = vmatpush1.msra.mxu0 %v2503
    %2505 = vmatprep.subr.mxu0 0.0
    %v2506 = vand.u32 %v1457, 4294901760
    %v2507 = vsub.f32 %v1457, %v2506
    %v2508 = vand.u32 %v2507, 4294901760
    %2509 = vmatpush1.msra.mxu0 %v2508
    %2510 = vmatprep.subr.mxu0 0.0
    %v2511 = vand.u32 %v1458, 4294901760
    %v2512 = vsub.f32 %v1458, %v2511
    %v2513 = vand.u32 %v2512, 4294901760
    %2514 = vmatpush1.msra.mxu0 %v2513
    %2515 = vmatprep.subr.mxu0 0.0
    %v2516 = vand.u32 %v1459, 4294901760
    %v2517 = vsub.f32 %v1459, %v2516
    %v2518 = vand.u32 %v2517, 4294901760
    %2519 = vmatpush1.msra.mxu0 %v2518
    %2520 = vmatprep.subr.mxu0 0.0
    %v2521 = vand.u32 %v1460, 4294901760
    %v2522 = vsub.f32 %v1460, %v2521
    %v2523 = vand.u32 %v2522, 4294901760
    %2524 = vmatpush1.msra.mxu0 %v2523
    %2525 = vmatprep.subr.mxu0 0.0
    %v2526 = vand.u32 %v1461, 4294901760
    %v2527 = vsub.f32 %v1461, %v2526
    %v2528 = vand.u32 %v2527, 4294901760
    %2529 = vmatpush1.msra.mxu0 %v2528
    %2530 = vmatprep.subr.mxu0 0.0
    %v2531 = vand.u32 %v1462, 4294901760
    %v2532 = vsub.f32 %v1462, %v2531
    %v2533 = vand.u32 %v2532, 4294901760
    %2534 = vmatpush1.msra.mxu0 %v2533
    %2535 = vmatprep.subr.mxu0 0.0
    %v2536 = vand.u32 %v1463, 4294901760
    %v2537 = vsub.f32 %v1463, %v2536
    %v2538 = vand.u32 %v2537, 4294901760
    %2539 = vmatpush1.msra.mxu0 %v2538
    %2540 = vmatprep.subr.mxu0 0.0
    %v2541 = vand.u32 %v1464, 4294901760
    %v2542 = vsub.f32 %v1464, %v2541
    %v2543 = vand.u32 %v2542, 4294901760
    %2544 = vmatpush1.msra.mxu0 %v2543
    %2545 = vmatprep.subr.mxu0 0.0
    %v2546 = vand.u32 %v1465, 4294901760
    %v2547 = vsub.f32 %v1465, %v2546
    %v2548 = vand.u32 %v2547, 4294901760
    %2549 = vmatpush1.msra.mxu0 %v2548
    %2550 = vmatprep.subr.mxu0 0.0
    %v2551 = vand.u32 %v1466, 4294901760
    %v2552 = vsub.f32 %v1466, %v2551
    %v2553 = vand.u32 %v2552, 4294901760
    %2554 = vmatpush1.msra.mxu0 %v2553
    %2555 = vmatprep.subr.mxu0 0.0
    %v2556 = vand.u32 %v1467, 4294901760
    %v2557 = vsub.f32 %v1467, %v2556
    %v2558 = vand.u32 %v2557, 4294901760
    %2559 = vmatpush1.msra.mxu0 %v2558
    %2560 = vmatprep.subr.mxu0 0.0
    %2561 = vmatpush1.msra.mxu0 0.0
    %2562 = vmatprep.subr.mxu0 0.0
    %2563 = vmatpush1.msra.mxu0 0.0
    %2564 = vmatprep.subr.mxu0 0.0
    %2565 = vmatpush1.msra.mxu0 0.0
    %2566 = vmatprep.subr.mxu0 0.0
    %2567 = vmatpush1.msra.mxu0 0.0
    %2568 = vmatprep.subr.mxu0 0.0
    %2569 = vmatpush1.msra.mxu0 0.0
    %2570 = vmatprep.subr.mxu0 0.0
    %2571 = vmatpush1.msra.mxu0 0.0
    %2572 = vmatprep.subr.mxu0 0.0
    %2573 = vmatpush1.msra.mxu0 0.0
    %2574 = vmatprep.subr.mxu0 0.0
    %2575 = vmatpush1.msra.mxu0 0.0
    %2576 = vmatprep.subr.mxu0 0.0
    %2577 = vmatpush1.msra.mxu0 0.0
    %2578 = vmatprep.subr.mxu0 0.0
    %2579 = vmatpush1.msra.mxu0 0.0
    %2580 = vmatprep.subr.mxu0 0.0
    %2581 = vmatpush1.msra.mxu0 0.0
    %2582 = vmatprep.subr.mxu0 0.0
    %2583 = vmatpush1.msra.mxu0 0.0
    %2584 = vmatprep.subr.mxu0 0.0
    %2585 = vmatpush1.msra.mxu0 0.0
    %2586 = vmatprep.subr.mxu0 0.0
    %2587 = vmatpush1.msra.mxu0 0.0
    %2588 = vmatprep.subr.mxu0 0.0
    %2589 = vmatpush1.msra.mxu0 0.0
    %2590 = vmatprep.subr.mxu0 0.0
    %2591 = vmatpush1.msra.mxu0 0.0
    %2592 = vmatprep.mubr.f32.mxu0 0.0
    %v2593 = vand.u32 %v1564, 4294901760
    %2594 = vmatmul.mubr.f32.gmra.mrb[0].mxu0 %v2593
    %v2595 = vpop.f32.mrb[0].mxu0
    %v2596 = vadd.f32 %v2357, %v2595
    %v2597 = vpop.f32.mrb[0].mxu0
    %2598 = vmatprep.mubr.f32.mxu0 0.0
    %v2599 = vand.u32 %v1565, 4294901760
    %2600 = vmatmul.mubr.f32.gmra.mrb[0].mxu0 %v2599
    %v2601 = vpop.f32.mrb[0].mxu0
    %v2602 = vadd.f32 %v2365, %v2601
    %v2603 = vpop.f32.mrb[0].mxu0
    %2604 = vmatprep.mubr.f32.mxu0 0.0
    %v2605 = vand.u32 %v1566, 4294901760
    %2606 = vmatmul.mubr.f32.gmra.mrb[0].mxu0 %v2605
    %v2607 = vpop.f32.mrb[0].mxu0
    %v2608 = vadd.f32 %v2373, %v2607
    %v2609 = vpop.f32.mrb[0].mxu0
    %2610 = vmatprep.mubr.f32.mxu0 0.0
    %v2611 = vand.u32 %v1567, 4294901760
    %2612 = vmatmul.mubr.f32.gmra.mrb[0].mxu0 %v2611
    %v2613 = vpop.f32.mrb[0].mxu0
    %v2614 = vadd.f32 %v2381, %v2613
    %v2615 = vpop.f32.mrb[0].mxu0
    %2616 = vmatprep.mubr.f32.mxu0 0.0
    %v2617 = vand.u32 %v1568, 4294901760
    %2618 = vmatmul.mubr.f32.gmra.mrb[0].mxu0 %v2617
    %v2619 = vpop.f32.mrb[0].mxu0
    %v2620 = vadd.f32 %v2389, %v2619
    %v2621 = vpop.f32.mrb[0].mxu0
    %2622 = vmatprep.mubr.f32.mxu0 0.0
    %v2623 = vand.u32 %v1569, 4294901760
    %2624 = vmatmul.mubr.f32.gmra.mrb[0].mxu0 %v2623
    %v2625 = vpop.f32.mrb[0].mxu0
    %v2626 = vadd.f32 %v2397, %v2625
    %v2627 = vpop.f32.mrb[0].mxu0
    %2628 = vmatprep.mubr.f32.mxu0 0.0
    %v2629 = vand.u32 %v1570, 4294901760
    %2630 = vmatmul.mubr.f32.gmra.mrb[0].mxu0 %v2629
    %v2631 = vpop.f32.mrb[0].mxu0
    %v2632 = vadd.f32 %v2405, %v2631
    %v2633 = vpop.f32.mrb[0].mxu0
    %2634 = vmatprep.mubr.f32.mxu0 0.0
    %v2635 = vand.u32 %v1571, 4294901760
    %2636 = vmatmul.mubr.f32.gmra.mrb[0].mxu0 %v2635
    %v2637 = vpop.f32.mrb[0].mxu0
    %v2638 = vadd.f32 %v2413, %v2637
    %v2639 = vpop.f32.mrb[0].mxu0
    %2640 = vmatprep.mubr.f32.mxu0 0.0
    %v2641 = vand.u32 %v1572, 4294901760
    %2642 = vmatmul.mubr.f32.gmra.mrb[0].mxu0 %v2641
    %v2643 = vpop.f32.mrb[0].mxu0
    %v2644 = vadd.f32 %v2421, %v2643
    %v2645 = vpop.f32.mrb[0].mxu0
    %2646 = vmatprep.mubr.f32.mxu0 0.0
    %v2647 = vand.u32 %v1573, 4294901760
    %2648 = vmatmul.mubr.f32.gmra.mrb[0].mxu0 %v2647
    %v2649 = vpop.f32.mrb[0].mxu0
    %v2650 = vadd.f32 %v2429, %v2649
    %v2651 = vpop.f32.mrb[0].mxu0
    %2652 = vmatprep.mubr.f32.mxu0 0.0
    %v2653 = vand.u32 %v1574, 4294901760
    %2654 = vmatmul.mubr.f32.gmra.mrb[0].mxu0 %v2653
    %v2655 = vpop.f32.mrb[0].mxu0
    %v2656 = vadd.f32 %v2437, %v2655
    %v2657 = vpop.f32.mrb[0].mxu0
    %2658 = vmatprep.mubr.f32.mxu0 0.0
    %v2659 = vand.u32 %v1575, 4294901760
    %2660 = vmatmul.mubr.f32.gmra.mrb[0].mxu0 %v2659
    %v2661 = vpop.f32.mrb[0].mxu0
    %v2662 = vadd.f32 %v2445, %v2661
    %v2663 = vpop.f32.mrb[0].mxu0
    %2664 = vmatprep.mubr.f32.mxu0 0.0
    %v2665 = vand.u32 %v1576, 4294901760
    %2666 = vmatmul.mubr.f32.gmra.mrb[0].mxu0 %v2665
    %v2667 = vpop.f32.mrb[0].mxu0
    %v2668 = vadd.f32 %v2453, %v2667
    %v2669 = vpop.f32.mrb[0].mxu0
    %2670 = vmatprep.mubr.f32.mxu0 0.0
    %v2671 = vand.u32 %v1577, 4294901760
    %2672 = vmatmul.mubr.f32.gmra.mrb[0].mxu0 %v2671
    %v2673 = vpop.f32.mrb[0].mxu0
    %v2674 = vadd.f32 %v2461, %v2673
    %v2675 = vpop.f32.mrb[0].mxu0
    %2676 = vmatprep.mubr.f32.mxu0 0.0
    %v2677 = vand.u32 %v1578, 4294901760
    %2678 = vmatmul.mubr.f32.gmra.mrb[0].mxu0 %v2677
    %v2679 = vpop.f32.mrb[0].mxu0
    %v2680 = vadd.f32 %v2469, %v2679
    %v2681 = vpop.f32.mrb[0].mxu0
    %2682 = vmatprep.mubr.f32.mxu0 0.0
    %v2683 = vand.u32 %v1579, 4294901760
    %2684 = vmatmul.mubr.f32.gmra.mrb[0].mxu0 %v2683
    %v2685 = vpop.f32.mrb[0].mxu0
    %v2686 = vadd.f32 %v2477, %v2685
    %v2687 = vpop.f32.mrb[0].mxu0
    %2688 = vdwg.mxu0
    %2689 = vmatprep.subr.mxu0 0.0
    %v2690 = vand.u32 %v1452, 4294901760
    %2691 = vmatpush1.msra.mxu0 %v2690
    %2692 = vmatprep.subr.mxu0 0.0
    %v2693 = vand.u32 %v1453, 4294901760
    %2694 = vmatpush1.msra.mxu0 %v2693
    %2695 = vmatprep.subr.mxu0 0.0
    %v2696 = vand.u32 %v1454, 4294901760
    %2697 = vmatpush1.msra.mxu0 %v2696
    %2698 = vmatprep.subr.mxu0 0.0
    %v2699 = vand.u32 %v1455, 4294901760
    %2700 = vmatpush1.msra.mxu0 %v2699
    %2701 = vmatprep.subr.mxu0 0.0
    %v2702 = vand.u32 %v1456, 4294901760
    %2703 = vmatpush1.msra.mxu0 %v2702
    %2704 = vmatprep.subr.mxu0 0.0
    %v2705 = vand.u32 %v1457, 4294901760
    %2706 = vmatpush1.msra.mxu0 %v2705
    %2707 = vmatprep.subr.mxu0 0.0
    %v2708 = vand.u32 %v1458, 4294901760
    %2709 = vmatpush1.msra.mxu0 %v2708
    %2710 = vmatprep.subr.mxu0 0.0
    %v2711 = vand.u32 %v1459, 4294901760
    %2712 = vmatpush1.msra.mxu0 %v2711
    %2713 = vmatprep.subr.mxu0 0.0
    %v2714 = vand.u32 %v1460, 4294901760
    %2715 = vmatpush1.msra.mxu0 %v2714
    %2716 = vmatprep.subr.mxu0 0.0
    %v2717 = vand.u32 %v1461, 4294901760
    %2718 = vmatpush1.msra.mxu0 %v2717
    %2719 = vmatprep.subr.mxu0 0.0
    %v2720 = vand.u32 %v1462, 4294901760
    %2721 = vmatpush1.msra.mxu0 %v2720
    %2722 = vmatprep.subr.mxu0 0.0
    %v2723 = vand.u32 %v1463, 4294901760
    %2724 = vmatpush1.msra.mxu0 %v2723
    %2725 = vmatprep.subr.mxu0 0.0
    %v2726 = vand.u32 %v1464, 4294901760
    %2727 = vmatpush1.msra.mxu0 %v2726
    %2728 = vmatprep.subr.mxu0 0.0
    %v2729 = vand.u32 %v1465, 4294901760
    %2730 = vmatpush1.msra.mxu0 %v2729
    %2731 = vmatprep.subr.mxu0 0.0
    %v2732 = vand.u32 %v1466, 4294901760
    %2733 = vmatpush1.msra.mxu0 %v2732
    %2734 = vmatprep.subr.mxu0 0.0
    %v2735 = vand.u32 %v1467, 4294901760
    %2736 = vmatpush1.msra.mxu0 %v2735
    %2737 = vmatprep.subr.mxu0 0.0
    %2738 = vmatpush1.msra.mxu0 0.0
    %2739 = vmatprep.subr.mxu0 0.0
    %2740 = vmatpush1.msra.mxu0 0.0
    %2741 = vmatprep.subr.mxu0 0.0
    %2742 = vmatpush1.msra.mxu0 0.0
    %2743 = vmatprep.subr.mxu0 0.0
    %2744 = vmatpush1.msra.mxu0 0.0
    %2745 = vmatprep.subr.mxu0 0.0
    %2746 = vmatpush1.msra.mxu0 0.0
    %2747 = vmatprep.subr.mxu0 0.0
    %2748 = vmatpush1.msra.mxu0 0.0
    %2749 = vmatprep.subr.mxu0 0.0
    %2750 = vmatpush1.msra.mxu0 0.0
    %2751 = vmatprep.subr.mxu0 0.0
    %2752 = vmatpush1.msra.mxu0 0.0
    %2753 = vmatprep.subr.mxu0 0.0
    %2754 = vmatpush1.msra.mxu0 0.0
    %2755 = vmatprep.subr.mxu0 0.0
    %2756 = vmatpush1.msra.mxu0 0.0
    %2757 = vmatprep.subr.mxu0 0.0
    %2758 = vmatpush1.msra.mxu0 0.0
    %2759 = vmatprep.subr.mxu0 0.0
    %2760 = vmatpush1.msra.mxu0 0.0
    %2761 = vmatprep.subr.mxu0 0.0
    %2762 = vmatpush1.msra.mxu0 0.0
    %2763 = vmatprep.subr.mxu0 0.0
    %2764 = vmatpush1.msra.mxu0 0.0
    %2765 = vmatprep.subr.mxu0 0.0
    %2766 = vmatpush1.msra.mxu0 0.0
    %2767 = vmatprep.subr.mxu0 0.0
    %2768 = vmatpush1.msra.mxu0 0.0
    %2769 = vmatprep.mubr.f32.mxu0 0.0
    %v2770 = vand.u32 %v1564, 4294901760
    %2771 = vmatmul.mubr.f32.gmra.mrb[0].mxu0 %v2770
    %v2772 = vpop.f32.mrb[0].mxu0
    %v2773 = vadd.f32 %v2596, %v2772
    %v2774 = vpop.f32.mrb[0].mxu0
    %2775 = vmatprep.mubr.f32.mxu0 0.0
    %v2776 = vand.u32 %v1565, 4294901760
    %2777 = vmatmul.mubr.f32.gmra.mrb[0].mxu0 %v2776
    %v2778 = vpop.f32.mrb[0].mxu0
    %v2779 = vadd.f32 %v2602, %v2778
    %v2780 = vpop.f32.mrb[0].mxu0
    %2781 = vmatprep.mubr.f32.mxu0 0.0
    %v2782 = vand.u32 %v1566, 4294901760
    %2783 = vmatmul.mubr.f32.gmra.mrb[0].mxu0 %v2782
    %v2784 = vpop.f32.mrb[0].mxu0
    %v2785 = vadd.f32 %v2608, %v2784
    %v2786 = vpop.f32.mrb[0].mxu0
    %2787 = vmatprep.mubr.f32.mxu0 0.0
    %v2788 = vand.u32 %v1567, 4294901760
    %2789 = vmatmul.mubr.f32.gmra.mrb[0].mxu0 %v2788
    %v2790 = vpop.f32.mrb[0].mxu0
    %v2791 = vadd.f32 %v2614, %v2790
    %v2792 = vpop.f32.mrb[0].mxu0
    %2793 = vmatprep.mubr.f32.mxu0 0.0
    %v2794 = vand.u32 %v1568, 4294901760
    %2795 = vmatmul.mubr.f32.gmra.mrb[0].mxu0 %v2794
    %v2796 = vpop.f32.mrb[0].mxu0
    %v2797 = vadd.f32 %v2620, %v2796
    %v2798 = vpop.f32.mrb[0].mxu0
    %2799 = vmatprep.mubr.f32.mxu0 0.0
    %v2800 = vand.u32 %v1569, 4294901760
    %2801 = vmatmul.mubr.f32.gmra.mrb[0].mxu0 %v2800
    %v2802 = vpop.f32.mrb[0].mxu0
    %v2803 = vadd.f32 %v2626, %v2802
    %v2804 = vpop.f32.mrb[0].mxu0
    %2805 = vmatprep.mubr.f32.mxu0 0.0
    %v2806 = vand.u32 %v1570, 4294901760
    %2807 = vmatmul.mubr.f32.gmra.mrb[0].mxu0 %v2806
    %v2808 = vpop.f32.mrb[0].mxu0
    %v2809 = vadd.f32 %v2632, %v2808
    %v2810 = vpop.f32.mrb[0].mxu0
    %2811 = vmatprep.mubr.f32.mxu0 0.0
    %v2812 = vand.u32 %v1571, 4294901760
    %2813 = vmatmul.mubr.f32.gmra.mrb[0].mxu0 %v2812
    %v2814 = vpop.f32.mrb[0].mxu0
    %v2815 = vadd.f32 %v2638, %v2814
    %v2816 = vpop.f32.mrb[0].mxu0
    %2817 = vmatprep.mubr.f32.mxu0 0.0
    %v2818 = vand.u32 %v1572, 4294901760
    %2819 = vmatmul.mubr.f32.gmra.mrb[0].mxu0 %v2818
    %v2820 = vpop.f32.mrb[0].mxu0
    %v2821 = vadd.f32 %v2644, %v2820
    %v2822 = vpop.f32.mrb[0].mxu0
    %2823 = vmatprep.mubr.f32.mxu0 0.0
    %v2824 = vand.u32 %v1573, 4294901760
    %2825 = vmatmul.mubr.f32.gmra.mrb[0].mxu0 %v2824
    %v2826 = vpop.f32.mrb[0].mxu0
    %v2827 = vadd.f32 %v2650, %v2826
    %v2828 = vpop.f32.mrb[0].mxu0
    %2829 = vmatprep.mubr.f32.mxu0 0.0
    %v2830 = vand.u32 %v1574, 4294901760
    %2831 = vmatmul.mubr.f32.gmra.mrb[0].mxu0 %v2830
    %v2832 = vpop.f32.mrb[0].mxu0
    %v2833 = vadd.f32 %v2656, %v2832
    %v2834 = vpop.f32.mrb[0].mxu0
    %2835 = vmatprep.mubr.f32.mxu0 0.0
    %v2836 = vand.u32 %v1575, 4294901760
    %2837 = vmatmul.mubr.f32.gmra.mrb[0].mxu0 %v2836
    %v2838 = vpop.f32.mrb[0].mxu0
    %v2839 = vadd.f32 %v2662, %v2838
    %v2840 = vpop.f32.mrb[0].mxu0
    %2841 = vmatprep.mubr.f32.mxu0 0.0
    %v2842 = vand.u32 %v1576, 4294901760
    %2843 = vmatmul.mubr.f32.gmra.mrb[0].mxu0 %v2842
    %v2844 = vpop.f32.mrb[0].mxu0
    %v2845 = vadd.f32 %v2668, %v2844
    %v2846 = vpop.f32.mrb[0].mxu0
    %2847 = vmatprep.mubr.f32.mxu0 0.0
    %v2848 = vand.u32 %v1577, 4294901760
    %2849 = vmatmul.mubr.f32.gmra.mrb[0].mxu0 %v2848
    %v2850 = vpop.f32.mrb[0].mxu0
    %v2851 = vadd.f32 %v2674, %v2850
    %v2852 = vpop.f32.mrb[0].mxu0
    %2853 = vmatprep.mubr.f32.mxu0 0.0
    %v2854 = vand.u32 %v1578, 4294901760
    %2855 = vmatmul.mubr.f32.gmra.mrb[0].mxu0 %v2854
    %v2856 = vpop.f32.mrb[0].mxu0
    %v2857 = vadd.f32 %v2680, %v2856
    %v2858 = vpop.f32.mrb[0].mxu0
    %2859 = vmatprep.mubr.f32.mxu0 0.0
    %v2860 = vand.u32 %v1579, 4294901760
    %2861 = vmatmul.mubr.f32.gmra.mrb[0].mxu0 %v2860
    %v2862 = vpop.f32.mrb[0].mxu0
    %v2863 = vadd.f32 %v2686, %v2862
    %v2864 = vpop.f32.mrb[0].mxu0
    %2865 = vdwg.mxu0
    %v2866 = vmul.f32 %v2773, 0.01
    %v2867 = vmul.f32 %v2779, 0.01
    %v2868 = vmul.f32 %v2785, 0.01
    %v2869 = vmul.f32 %v2791, 0.01
    %v2870 = vmul.f32 %v2797, 0.01
    %v2871 = vmul.f32 %v2803, 0.01
    %v2872 = vmul.f32 %v2809, 0.01
    %v2873 = vmul.f32 %v2815, 0.01
    %v2874 = vmul.f32 %v2821, 0.01
    %v2875 = vmul.f32 %v2827, 0.01
    %v2876 = vmul.f32 %v2833, 0.01
    %v2877 = vmul.f32 %v2839, 0.01
    %v2878 = vmul.f32 %v2845, 0.01
    %v2879 = vmul.f32 %v2851, 0.01
    %v2880 = vmul.f32 %v2857, 0.01
    %v2881 = vmul.f32 %v2863, 0.01
    %v2882 = vadd.f32 %v20, %v2866
    %v2883 = vadd.f32 %v21, %v2867
    %v2884 = vadd.f32 %v22, %v2868
    %v2885 = vadd.f32 %v23, %v2869
    %v2886 = vadd.f32 %v24, %v2870
    %v2887 = vadd.f32 %v25, %v2871
    %v2888 = vadd.f32 %v26, %v2872
    %v2889 = vadd.f32 %v27, %v2873
    %v2890 = vadd.f32 %v28, %v2874
    %v2891 = vadd.f32 %v29, %v2875
    %v2892 = vadd.f32 %v30, %v2876
    %v2893 = vadd.f32 %v31, %v2877
    %v2894 = vadd.f32 %v32, %v2878
    %v2895 = vadd.f32 %v33, %v2879
    %v2896 = vadd.f32 %v34, %v2880
    %v2897 = vadd.f32 %v35, %v2881
    %2898 = vst [vmem:[%s5] sm:$0xff] %v2882
    %2899 = vst [vmem:[%s5 + $0x8] sm:$0xff] %v2883
    %2900 = vst [vmem:[%s5 + $0x10] sm:$0xff] %v2884
    %2901 = vst [vmem:[%s5 + $0x18] sm:$0xff] %v2885
    %2902 = vst [vmem:[%s5 + $0x20] sm:$0xff] %v2886
    %2903 = vst [vmem:[%s5 + $0x28] sm:$0xff] %v2887
    %2904 = vst [vmem:[%s5 + $0x30] sm:$0xff] %v2888
    %2905 = vst [vmem:[%s5 + $0x38] sm:$0xff] %v2889
    %2906 = vst [vmem:[%s5 + $0x40] sm:$0xff] %v2890
    %2907 = vst [vmem:[%s5 + $0x48] sm:$0xff] %v2891
    %2908 = vst [vmem:[%s5 + $0x50] sm:$0xff] %v2892
    %2909 = vst [vmem:[%s5 + $0x58] sm:$0xff] %v2893
    %2910 = vst [vmem:[%s5 + $0x60] sm:$0xff] %v2894
    %2911 = vst [vmem:[%s5 + $0x68] sm:$0xff] %v2895
    %2912 = vst [vmem:[%s5 + $0x70] sm:$0xff] %v2896
    %2913 = vst [vmem:[%s5 + $0x78] sm:$0xff] %v2897
    // Predicated region
    $region18: #{center_loss_forward.1} parent=1 // pred_check
      _
    $region19: #{center_loss_forward.1} parent=1 // pred_check_branch
      %2915 = sbr.rel (0) target = $region21
    $region20: #{center_loss_forward.1} parent=1 // pred_region
      %s2917 = ssub.s32 16, 16
      %2918 = vsyncadd [#allocation3], %s2917
      %2921 = dma.smem_to_hbm [#allocation2], 16, %s4, [#allocation3]
    $region21: #{center_loss_forward.1} parent=1 // pred_fallthru
      _
    // Predicated region
    $region22: #{center_loss_forward.1} parent=1 // pred_check
      _
    $region23: #{center_loss_forward.1} parent=1 // pred_check_branch
      %2923 = sbr.rel (0) target = $region25
    $region24: #{center_loss_forward.1} parent=1 // pred_region
      _
    $region25: #{center_loss_forward.1} parent=1 // pred_fallthru
      _
    // Predicated region
    $region26: #{center_loss_forward.1} parent=1 // pred_check
      _
    $region27: #{center_loss_forward.1} parent=1 // pred_check_branch
      %2925 = sbr.rel (0) target = $region29
    $region28: #{center_loss_forward.1} parent=1 // pred_region
      %2926 = dma.done [#allocation3], 16
    $region29: #{center_loss_forward.1} parent=1 // pred_fallthru
      _
    // Predicated region
    $region30: #{center_loss_forward.1} parent=1 // pred_check
      _
    $region31: #{center_loss_forward.1} parent=1 // pred_check_branch
      %2928 = sbr.rel (0) target = $region33
    $region32: #{center_loss_forward.1} parent=1 // pred_region
      _
    $region33: #{center_loss_forward.1} parent=1 // pred_fallthru
      _
    %2929 = sfence
    %2930 = vsyncpa [#allocation3], 1

</llo_original>
